<compile_context>
chip_gen: v6e
topology: v6e:2x2x1
jax: 0.10.0
libtpu: 0.0.40
codegen_flags: <defaults>
</compile_context>

<pallas_src>
import jax
import jax.numpy as jnp
from jax.experimental import pallas as pl
from jax.experimental.pallas import tpu as pltpu

HIDDEN = 128     # RoBERTa hidden size, shrunk to one lane-width for this synthetic test
VOCAB = 64
EPS = 1e-5
TM = 256         # tokens per grid step


def embed_ln_kernel(ids_ref, table_ref, gb_ref, out_ref):
    """One grid step = TM tokens.

    ids_ref:   (TM, 1) int32 token ids for this tile.
    table_ref: (V, H)  f32 embedding table (VMEM-resident, same block every step).
    gb_ref:    (2, H)  f32 packed [gamma; beta] (VMEM-resident).
    out_ref:   (TM, H) f32 LayerNorm(embed(ids)).
    """
    ids = ids_ref[...]                                        # (TM, 1) int32
    table = table_ref[...]                                    # (V, H)  f32
    tm = ids.shape[0]
    v = table.shape[0]

    # In-VMEM gather: one-hot (TM, V) @ table (V, H) on the MXU.
    vocab_iota = jax.lax.broadcasted_iota(jnp.int32, (tm, v), 1)
    onehot = (ids == vocab_iota).astype(jnp.float32)          # (TM, V)
    x = jnp.dot(onehot, table,
                preferred_element_type=jnp.float32,
                precision=jax.lax.Precision.HIGHEST)          # (TM, H)

    # Fused LayerNorm over the hidden axis (f32 math).
    mean = jnp.mean(x, axis=-1, keepdims=True)
    cent = x - mean
    var = jnp.mean(cent * cent, axis=-1, keepdims=True)
    inv = jax.lax.rsqrt(var + EPS)

    gb = gb_ref[...]                                          # (2, H)
    gamma = gb[0:1, :]
    beta = gb[1:2, :]
    out_ref[...] = (cent * inv * gamma + beta).astype(out_ref.dtype)


def embed_layernorm(token_ids, table, gamma_beta, tm=TM):
    """Gather + LayerNorm: token_ids [N] int32 -> [N, H] float32."""
    n = token_ids.shape[0]
    v, h = table.shape
    n_tiles = pl.cdiv(n, tm)
    n_pad = n_tiles * tm

    # Pad ids to a whole number of tiles (pad tokens -> id 0; rows sliced off below).
    ids2d = jnp.zeros((n_pad, 1), jnp.int32).at[:n, 0].set(token_ids.astype(jnp.int32))

    grid_spec = pltpu.PrefetchScalarGridSpec(
        num_scalar_prefetch=0,
        grid=(n_tiles,),
        in_specs=[
            pl.BlockSpec((tm, 1), lambda i: (i, 0)),    # this tile's token ids
            pl.BlockSpec((v, h), lambda i: (0, 0)),     # whole table, resident
            pl.BlockSpec((2, h), lambda i: (0, 0)),     # packed gamma/beta, resident
        ],
        out_specs=pl.BlockSpec((tm, h), lambda i: (i, 0)),
    )
    out = pl.pallas_call(
        embed_ln_kernel,
        out_shape=jax.ShapeDtypeStruct((n_pad, h), jnp.float32),
        grid_spec=grid_spec,
        compiler_params=pltpu.CompilerParams(
            dimension_semantics=("parallel",)),
    )(ids2d, table, gamma_beta)
    return out[:n]


def roberta_prober_forward(review_ids, reply_ids, params):
    """Pallas-backed stand-in for RobertaProber.forward.

    review_ids, reply_ids: [B, S] int32 token ids.
    Returns contextual (embedded + layer-normed) features [B, S, H] for each.
    Both passes are fused into a single pallas_call.
    """
    table, gamma_beta = params["table"], params["gamma_beta"]
    b, s = review_ids.shape
    h = table.shape[1]
    n = b * s
    all_ids = jnp.concatenate([review_ids.reshape(-1), reply_ids.reshape(-1)], axis=0)
    emb = embed_layernorm(all_ids, table, gamma_beta)
    return emb[:n].reshape(b, s, h), emb[n:].reshape(b, s, h)


def init_params(key):
    (k_tab,) = jax.random.split(key, 1)
    table = jax.random.normal(k_tab, (VOCAB, HIDDEN), jnp.float32) * 0.02
    gamma = jnp.ones((1, HIDDEN), jnp.float32)
    beta = jnp.zeros((1, HIDDEN), jnp.float32)
    gamma_beta = jnp.concatenate([gamma, beta], axis=0)       # (2, H)
    return {"table": table, "gamma_beta": gamma_beta}


def _reference(ids, params):
    x = params["table"][ids.reshape(-1)]
    mean = jnp.mean(x, axis=-1, keepdims=True)
    cent = x - mean
    var = jnp.mean(cent * cent, axis=-1, keepdims=True)
    gamma = params["gamma_beta"][0:1, :]
    beta = params["gamma_beta"][1:2, :]
    y = cent * jax.lax.rsqrt(var + EPS) * gamma + beta
    return y.reshape(ids.shape + (HIDDEN,))


if __name__ == "__main__":
    key = jax.random.PRNGKey(0)
    k1, k2, k3 = jax.random.split(key, 3)

    B, S = 2, 8
    review_ids = jax.random.randint(k1, (B, S), 0, VOCAB, dtype=jnp.int32)
    reply_ids = jax.random.randint(k2, (B, S), 0, VOCAB, dtype=jnp.int32)
    params = init_params(k3)

    review_out, reply_out = roberta_prober_forward(review_ids, reply_ids, params)
    jax.block_until_ready((review_out, reply_out))

    # correctness check against a pure-JAX reference
    ref_review = _reference(review_ids, params)
    ref_reply = _reference(reply_ids, params)
    assert jnp.allclose(review_out, ref_review, atol=1e-5), "review mismatch"
    assert jnp.allclose(reply_out, ref_reply, atol=1e-5), "reply mismatch"

    print("KERNEL_OK")
</pallas_src>

<mosaic_0001>
module attributes {stable_mosaic.version = 11 : i64} {
  func.func @embed_ln_kernel(%arg0: i32, %arg1: memref<256x1xi32, #tpu.memory_space<vmem>>, %arg2: memref<64x128xf32, #tpu.memory_space<vmem>>, %arg3: memref<2x128xf32, #tpu.memory_space<vmem>>, %arg4: memref<256x128xf32, #tpu.memory_space<vmem>>) attributes {dimension_semantics = [#tpu.dimension_semantics<parallel>], iteration_bounds = array<i64: 1>, scalar_prefetch = 0 : i64, scratch_operands = 0 : i64, tpu.core_type = #tpu.core_type<tc>, window_params = [{transform_indices = @transform_0, window_bounds = array<i64: 256, 1>}, {pipeline_mode = #tpu.pipeline_mode<synchronous>, transform_indices = @transform_1, window_bounds = array<i64: 64, 128>}, {pipeline_mode = #tpu.pipeline_mode<synchronous>, transform_indices = @transform_2, window_bounds = array<i64: 2, 128>}, {transform_indices = @transform_3, window_bounds = array<i64: 256, 128>}]} {
    %c0 = arith.constant 0 : index
    %c0_0 = arith.constant 0 : index
    %0 = vector.load %arg1[%c0, %c0_0] : memref<256x1xi32, #tpu.memory_space<vmem>>, vector<256x1xi32>
    %c0_1 = arith.constant 0 : index
    %c0_2 = arith.constant 0 : index
    %1 = vector.load %arg2[%c0_1, %c0_2] : memref<64x128xf32, #tpu.memory_space<vmem>>, vector<64x128xf32>
    %2 = tpu.iota {dimensions = array<i32: 1>} : vector<256x64xi32>
    %3 = vector.broadcast %0 : vector<256x1xi32> to vector<256x64xi32>
    %4 = arith.cmpi eq, %3, %2 : vector<256x64xi32>
    %5 = arith.extui %4 : vector<256x64xi1> to vector<256x64xi32>
    %6 = arith.sitofp %5 : vector<256x64xi32> to vector<256x64xf32>
    %cst = arith.constant dense<0.000000e+00> : vector<256x128xf32>
    %7 = tpu.matmul %6, %1, %cst {dimension_numbers = #tpu.dot_dimension_numbers<[1], [0], [0], [1], [0, 0, 1, 1], [], []>, precision = #tpu.contract_precision<fp32>} : vector<256x64xf32>, vector<64x128xf32>, vector<256x128xf32> -> vector<256x128xf32>
    %cst_3 = arith.constant dense<0.000000e+00> : vector<256xf32>
    %8 = vector.multi_reduction <add>, %7, %cst_3 [1] : vector<256x128xf32> to vector<256xf32>
    %9 = vector.shape_cast %8 : vector<256xf32> to vector<256x1xf32>
    %cst_4 = arith.constant 1.280000e+02 : f32
    %10 = vector.broadcast %cst_4 : f32 to vector<256x1xf32>
    %11 = arith.divf %9, %10 : vector<256x1xf32>
    %12 = vector.broadcast %11 : vector<256x1xf32> to vector<256x128xf32>
    %13 = arith.subf %7, %12 : vector<256x128xf32>
    %14 = arith.mulf %13, %13 : vector<256x128xf32>
    %cst_5 = arith.constant dense<0.000000e+00> : vector<256xf32>
    %15 = vector.multi_reduction <add>, %14, %cst_5 [1] : vector<256x128xf32> to vector<256xf32>
    %16 = vector.shape_cast %15 : vector<256xf32> to vector<256x1xf32>
    %cst_6 = arith.constant 1.280000e+02 : f32
    %17 = vector.broadcast %cst_6 : f32 to vector<256x1xf32>
    %18 = arith.divf %16, %17 : vector<256x1xf32>
    %cst_7 = arith.constant 9.99999974E-6 : f32
    %19 = vector.broadcast %cst_7 : f32 to vector<256x1xf32>
    %20 = arith.addf %18, %19 : vector<256x1xf32>
    %21 = math.rsqrt %20 : vector<256x1xf32>
    %c0_8 = arith.constant 0 : index
    %c0_9 = arith.constant 0 : index
    %22 = vector.load %arg3[%c0_8, %c0_9] : memref<2x128xf32, #tpu.memory_space<vmem>>, vector<2x128xf32>
    %23 = vector.extract_strided_slice %22 {offsets = [0, 0], sizes = [1, 128], strides = [1, 1]} : vector<2x128xf32> to vector<1x128xf32>
    %24 = vector.extract_strided_slice %22 {offsets = [1, 0], sizes = [1, 128], strides = [1, 1]} : vector<2x128xf32> to vector<1x128xf32>
    %25 = vector.broadcast %21 : vector<256x1xf32> to vector<256x128xf32>
    %26 = arith.mulf %13, %25 : vector<256x128xf32>
    %27 = vector.broadcast %23 : vector<1x128xf32> to vector<256x128xf32>
    %28 = arith.mulf %26, %27 : vector<256x128xf32>
    %29 = vector.broadcast %24 : vector<1x128xf32> to vector<256x128xf32>
    %30 = arith.addf %28, %29 : vector<256x128xf32>
    %c0_10 = arith.constant 0 : index
    %c0_11 = arith.constant 0 : index
    %31 = vector.load %arg4[%c0_10, %c0_11] : memref<256x128xf32, #tpu.memory_space<vmem>>, vector<256x128xf32>
    tpu.vector_store %arg4[%c0_10, %c0_11], %30 {strides = array<i32>} : memref<256x128xf32, #tpu.memory_space<vmem>>, vector<256x128xf32>,
    return
  }
  func.func @transform_0(%arg0: i32) -> (i32, i32) {
    %c0_i32 = arith.constant 0 : i32
    %c0_i32_0 = arith.constant 0 : i32
    return %arg0, %c0_i32 : i32, i32
  }
  func.func @transform_1(%arg0: i32) -> (i32, i32) {
    %c0_i32 = arith.constant 0 : i32
    %c0_i32_0 = arith.constant 0 : i32
    %c0_i32_1 = arith.constant 0 : i32
    return %c0_i32, %c0_i32_0 : i32, i32
  }
  func.func @transform_2(%arg0: i32) -> (i32, i32) {
    %c0_i32 = arith.constant 0 : i32
    %c0_i32_0 = arith.constant 0 : i32
    %c0_i32_1 = arith.constant 0 : i32
    return %c0_i32, %c0_i32_0 : i32, i32
  }
  func.func @transform_3(%arg0: i32) -> (i32, i32) {
    %c0_i32 = arith.constant 0 : i32
    %c0_i32_0 = arith.constant 0 : i32
    return %arg0, %c0_i32 : i32, i32
  }
}

</mosaic_0001>

<llo_original>
// kernel: tpu_custom_call.1
$region0: #{tpu_custom_call.1}
  #allocation0 [shape = 'u32[]', space=smem, size = 0x4, offset = 0x4, fixed_abs, tag = 'smem constant byte address 0x4 - core index']
  #allocation1 [shape = 'u32[144,128]{1,0:T(1,128)}', space=vmem, size = 0x12000, scoped, tag = 'internal scratch']
  %s0 = inlined_call_operand.vmem [shape: s32[256,1], index: 0, kind: input, shape index: {}]
  %s1 = inlined_call_operand.vmem [shape: f32[64,128], index: 1, kind: input, shape index: {}]
  %s2 = inlined_call_operand.vmem [shape: f32[2,128], index: 2, kind: input, shape index: {}]
  %s3 = inlined_call_operand.hbm [shape: f32[256,128], index: 3, kind: output, shape index: {}]
  %s4 = sld [smem:[#allocation0]]
  $region22: #{tpu_custom_call.1} parent=0
    _
  %s6 = ssub.s32 1, %s4
  %s7 = scalar_select 0, %s6, %s4
  $region1: #{tpu_custom_call.1} parent=0
    #allocation2 [shape = 'u8[131072]{0}', space=vmem, size = 0x20000, scoped, tag = 'output window, operand 0, single buffered']
    #allocation3 [shape = 's32[1]{0}', space=sflag, size = 0x4, scoped, tag = 'scoped memory for tpu_custom_call.1']
    %8 = vsyncpa [#allocation3], 0
    // Predicated region
    $region2: #{tpu_custom_call.1} parent=1 // pred_check
      _
    $region3: #{tpu_custom_call.1} parent=1 // pred_check_branch
      %10 = sbr.rel (0) target = $region5
    $region4: #{tpu_custom_call.1} parent=1 // pred_region
      _
    $region5: #{tpu_custom_call.1} parent=1 // pred_fallthru
      _
    // Predicated region
    $region6: #{tpu_custom_call.1} parent=1 // pred_check
      _
    $region7: #{tpu_custom_call.1} parent=1 // pred_check_branch
      %12 = sbr.rel (0) target = $region9
    $region8: #{tpu_custom_call.1} parent=1 // pred_region
      _
    $region9: #{tpu_custom_call.1} parent=1 // pred_fallthru
      _
    // Predicated region
    $region10: #{tpu_custom_call.1} parent=1 // pred_check
      _
    $region11: #{tpu_custom_call.1} parent=1 // pred_check_branch
      %14 = sbr.rel (0) target = $region13
    $region12: #{tpu_custom_call.1} parent=1 // pred_region
      _
    $region13: #{tpu_custom_call.1} parent=1 // pred_fallthru
      _
    %v15 = vld [vmem:[%s0] sm:$0xff]
    %v16 = vld [vmem:[%s0 + $0x8] sm:$0xff]
    %v17 = vld [vmem:[%s0 + $0x10] sm:$0xff]
    %v18 = vld [vmem:[%s0 + $0x18] sm:$0xff]
    %v19 = vld [vmem:[%s0 + $0x20] sm:$0xff]
    %v20 = vld [vmem:[%s0 + $0x28] sm:$0xff]
    %v21 = vld [vmem:[%s0 + $0x30] sm:$0xff]
    %v22 = vld [vmem:[%s0 + $0x38] sm:$0xff]
    %v23 = vld [vmem:[%s0 + $0x40] sm:$0xff]
    %v24 = vld [vmem:[%s0 + $0x48] sm:$0xff]
    %v25 = vld [vmem:[%s0 + $0x50] sm:$0xff]
    %v26 = vld [vmem:[%s0 + $0x58] sm:$0xff]
    %v27 = vld [vmem:[%s0 + $0x60] sm:$0xff]
    %v28 = vld [vmem:[%s0 + $0x68] sm:$0xff]
    %v29 = vld [vmem:[%s0 + $0x70] sm:$0xff]
    %v30 = vld [vmem:[%s0 + $0x78] sm:$0xff]
    %v31 = vld [vmem:[%s0 + $0x80] sm:$0xff]
    %v32 = vld [vmem:[%s0 + $0x88] sm:$0xff]
    %v33 = vld [vmem:[%s0 + $0x90] sm:$0xff]
    %v34 = vld [vmem:[%s0 + $0x98] sm:$0xff]
    %v35 = vld [vmem:[%s0 + $0xa0] sm:$0xff]
    %v36 = vld [vmem:[%s0 + $0xa8] sm:$0xff]
    %v37 = vld [vmem:[%s0 + $0xb0] sm:$0xff]
    %v38 = vld [vmem:[%s0 + $0xb8] sm:$0xff]
    %v39 = vld [vmem:[%s0 + $0xc0] sm:$0xff]
    %v40 = vld [vmem:[%s0 + $0xc8] sm:$0xff]
    %v41 = vld [vmem:[%s0 + $0xd0] sm:$0xff]
    %v42 = vld [vmem:[%s0 + $0xd8] sm:$0xff]
    %v43 = vld [vmem:[%s0 + $0xe0] sm:$0xff]
    %v44 = vld [vmem:[%s0 + $0xe8] sm:$0xff]
    %v45 = vld [vmem:[%s0 + $0xf0] sm:$0xff]
    %v46 = vld [vmem:[%s0 + $0xf8] sm:$0xff]
    %v47 = vld [vmem:[%s1] sm:$0xff]
    %v48 = vld [vmem:[%s1 + $0x8] sm:$0xff]
    %v49 = vld [vmem:[%s1 + $0x10] sm:$0xff]
    %v50 = vld [vmem:[%s1 + $0x18] sm:$0xff]
    %v51 = vld [vmem:[%s1 + $0x20] sm:$0xff]
    %v52 = vld [vmem:[%s1 + $0x28] sm:$0xff]
    %v53 = vld [vmem:[%s1 + $0x30] sm:$0xff]
    %v54 = vld [vmem:[%s1 + $0x38] sm:$0xff]
    %v55 = vlaneseq
    %v56 = vand.u32 %v55, 127
    %57 = vset.pattern.permute.xlu0 0
    %58 = vperm.xlu0 %57, %v15
    %v59 = vpop.permute.xlu0 %58
    %60 = vset.pattern.permute.xlu0 0
    %61 = vperm.xlu0 %60, %v16
    %v62 = vpop.permute.xlu0 %61
    %63 = vset.pattern.permute.xlu0 0
    %64 = vperm.xlu0 %63, %v17
    %v65 = vpop.permute.xlu0 %64
    %66 = vset.pattern.permute.xlu0 0
    %67 = vperm.xlu0 %66, %v18
    %v68 = vpop.permute.xlu0 %67
    %69 = vset.pattern.permute.xlu0 0
    %70 = vperm.xlu0 %69, %v19
    %v71 = vpop.permute.xlu0 %70
    %72 = vset.pattern.permute.xlu0 0
    %73 = vperm.xlu0 %72, %v20
    %v74 = vpop.permute.xlu0 %73
    %75 = vset.pattern.permute.xlu0 0
    %76 = vperm.xlu0 %75, %v21
    %v77 = vpop.permute.xlu0 %76
    %78 = vset.pattern.permute.xlu0 0
    %79 = vperm.xlu0 %78, %v22
    %v80 = vpop.permute.xlu0 %79
    %81 = vset.pattern.permute.xlu0 0
    %82 = vperm.xlu0 %81, %v23
    %v83 = vpop.permute.xlu0 %82
    %84 = vset.pattern.permute.xlu0 0
    %85 = vperm.xlu0 %84, %v24
    %v86 = vpop.permute.xlu0 %85
    %87 = vset.pattern.permute.xlu0 0
    %88 = vperm.xlu0 %87, %v25
    %v89 = vpop.permute.xlu0 %88
    %90 = vset.pattern.permute.xlu0 0
    %91 = vperm.xlu0 %90, %v26
    %v92 = vpop.permute.xlu0 %91
    %93 = vset.pattern.permute.xlu0 0
    %94 = vperm.xlu0 %93, %v27
    %v95 = vpop.permute.xlu0 %94
    %96 = vset.pattern.permute.xlu0 0
    %97 = vperm.xlu0 %96, %v28
    %v98 = vpop.permute.xlu0 %97
    %99 = vset.pattern.permute.xlu0 0
    %100 = vperm.xlu0 %99, %v29
    %v101 = vpop.permute.xlu0 %100
    %102 = vset.pattern.permute.xlu0 0
    %103 = vperm.xlu0 %102, %v30
    %v104 = vpop.permute.xlu0 %103
    %105 = vset.pattern.permute.xlu0 0
    %106 = vperm.xlu0 %105, %v31
    %v107 = vpop.permute.xlu0 %106
    %108 = vset.pattern.permute.xlu0 0
    %109 = vperm.xlu0 %108, %v32
    %v110 = vpop.permute.xlu0 %109
    %111 = vset.pattern.permute.xlu0 0
    %112 = vperm.xlu0 %111, %v33
    %v113 = vpop.permute.xlu0 %112
    %114 = vset.pattern.permute.xlu0 0
    %115 = vperm.xlu0 %114, %v34
    %v116 = vpop.permute.xlu0 %115
    %117 = vset.pattern.permute.xlu0 0
    %118 = vperm.xlu0 %117, %v35
    %v119 = vpop.permute.xlu0 %118
    %120 = vset.pattern.permute.xlu0 0
    %121 = vperm.xlu0 %120, %v36
    %v122 = vpop.permute.xlu0 %121
    %123 = vset.pattern.permute.xlu0 0
    %124 = vperm.xlu0 %123, %v37
    %v125 = vpop.permute.xlu0 %124
    %126 = vset.pattern.permute.xlu0 0
    %127 = vperm.xlu0 %126, %v38
    %v128 = vpop.permute.xlu0 %127
    %129 = vset.pattern.permute.xlu0 0
    %130 = vperm.xlu0 %129, %v39
    %v131 = vpop.permute.xlu0 %130
    %132 = vset.pattern.permute.xlu0 0
    %133 = vperm.xlu0 %132, %v40
    %v134 = vpop.permute.xlu0 %133
    %135 = vset.pattern.permute.xlu0 0
    %136 = vperm.xlu0 %135, %v41
    %v137 = vpop.permute.xlu0 %136
    %138 = vset.pattern.permute.xlu0 0
    %139 = vperm.xlu0 %138, %v42
    %v140 = vpop.permute.xlu0 %139
    %141 = vset.pattern.permute.xlu0 0
    %142 = vperm.xlu0 %141, %v43
    %v143 = vpop.permute.xlu0 %142
    %144 = vset.pattern.permute.xlu0 0
    %145 = vperm.xlu0 %144, %v44
    %v146 = vpop.permute.xlu0 %145
    %147 = vset.pattern.permute.xlu0 0
    %148 = vperm.xlu0 %147, %v45
    %v149 = vpop.permute.xlu0 %148
    %150 = vset.pattern.permute.xlu0 0
    %151 = vperm.xlu0 %150, %v46
    %v152 = vpop.permute.xlu0 %151
    %vm153 = vcmp.eq.s32.totalorder %v59, %v56
    %vm154 = vcmp.eq.s32.totalorder %v62, %v56
    %vm155 = vcmp.eq.s32.totalorder %v65, %v56
    %vm156 = vcmp.eq.s32.totalorder %v68, %v56
    %vm157 = vcmp.eq.s32.totalorder %v71, %v56
    %vm158 = vcmp.eq.s32.totalorder %v74, %v56
    %vm159 = vcmp.eq.s32.totalorder %v77, %v56
    %vm160 = vcmp.eq.s32.totalorder %v80, %v56
    %vm161 = vcmp.eq.s32.totalorder %v83, %v56
    %vm162 = vcmp.eq.s32.totalorder %v86, %v56
    %vm163 = vcmp.eq.s32.totalorder %v89, %v56
    %vm164 = vcmp.eq.s32.totalorder %v92, %v56
    %vm165 = vcmp.eq.s32.totalorder %v95, %v56
    %vm166 = vcmp.eq.s32.totalorder %v98, %v56
    %vm167 = vcmp.eq.s32.totalorder %v101, %v56
    %vm168 = vcmp.eq.s32.totalorder %v104, %v56
    %vm169 = vcmp.eq.s32.totalorder %v107, %v56
    %vm170 = vcmp.eq.s32.totalorder %v110, %v56
    %vm171 = vcmp.eq.s32.totalorder %v113, %v56
    %vm172 = vcmp.eq.s32.totalorder %v116, %v56
    %vm173 = vcmp.eq.s32.totalorder %v119, %v56
    %vm174 = vcmp.eq.s32.totalorder %v122, %v56
    %vm175 = vcmp.eq.s32.totalorder %v125, %v56
    %vm176 = vcmp.eq.s32.totalorder %v128, %v56
    %vm177 = vcmp.eq.s32.totalorder %v131, %v56
    %vm178 = vcmp.eq.s32.totalorder %v134, %v56
    %vm179 = vcmp.eq.s32.totalorder %v137, %v56
    %vm180 = vcmp.eq.s32.totalorder %v140, %v56
    %vm181 = vcmp.eq.s32.totalorder %v143, %v56
    %vm182 = vcmp.eq.s32.totalorder %v146, %v56
    %vm183 = vcmp.eq.s32.totalorder %v149, %v56
    %vm184 = vcmp.eq.s32.totalorder %v152, %v56
    %v185 = vsel %vm153, 1, 0
    %v186 = vsel %vm154, 1, 0
    %v187 = vsel %vm155, 1, 0
    %v188 = vsel %vm156, 1, 0
    %v189 = vsel %vm157, 1, 0
    %v190 = vsel %vm158, 1, 0
    %v191 = vsel %vm159, 1, 0
    %v192 = vsel %vm160, 1, 0
    %v193 = vsel %vm161, 1, 0
    %v194 = vsel %vm162, 1, 0
    %v195 = vsel %vm163, 1, 0
    %v196 = vsel %vm164, 1, 0
    %v197 = vsel %vm165, 1, 0
    %v198 = vsel %vm166, 1, 0
    %v199 = vsel %vm167, 1, 0
    %v200 = vsel %vm168, 1, 0
    %v201 = vsel %vm169, 1, 0
    %v202 = vsel %vm170, 1, 0
    %v203 = vsel %vm171, 1, 0
    %v204 = vsel %vm172, 1, 0
    %v205 = vsel %vm173, 1, 0
    %v206 = vsel %vm174, 1, 0
    %v207 = vsel %vm175, 1, 0
    %v208 = vsel %vm176, 1, 0
    %v209 = vsel %vm177, 1, 0
    %v210 = vsel %vm178, 1, 0
    %v211 = vsel %vm179, 1, 0
    %v212 = vsel %vm180, 1, 0
    %v213 = vsel %vm181, 1, 0
    %v214 = vsel %vm182, 1, 0
    %v215 = vsel %vm183, 1, 0
    %v216 = vsel %vm184, 1, 0
    %v217 = vcvt.s32.f32 %v185
    %v218 = vcvt.s32.f32 %v186
    %v219 = vcvt.s32.f32 %v187
    %v220 = vcvt.s32.f32 %v188
    %v221 = vcvt.s32.f32 %v189
    %v222 = vcvt.s32.f32 %v190
    %v223 = vcvt.s32.f32 %v191
    %v224 = vcvt.s32.f32 %v192
    %v225 = vcvt.s32.f32 %v193
    %v226 = vcvt.s32.f32 %v194
    %v227 = vcvt.s32.f32 %v195
    %v228 = vcvt.s32.f32 %v196
    %v229 = vcvt.s32.f32 %v197
    %v230 = vcvt.s32.f32 %v198
    %v231 = vcvt.s32.f32 %v199
    %v232 = vcvt.s32.f32 %v200
    %v233 = vcvt.s32.f32 %v201
    %v234 = vcvt.s32.f32 %v202
    %v235 = vcvt.s32.f32 %v203
    %v236 = vcvt.s32.f32 %v204
    %v237 = vcvt.s32.f32 %v205
    %v238 = vcvt.s32.f32 %v206
    %v239 = vcvt.s32.f32 %v207
    %v240 = vcvt.s32.f32 %v208
    %v241 = vcvt.s32.f32 %v209
    %v242 = vcvt.s32.f32 %v210
    %v243 = vcvt.s32.f32 %v211
    %v244 = vcvt.s32.f32 %v212
    %v245 = vcvt.s32.f32 %v213
    %v246 = vcvt.s32.f32 %v214
    %v247 = vcvt.s32.f32 %v215
    %v248 = vcvt.s32.f32 %v216
    %vm249 = vcmask 523264
    %v251 = vsel %vm249, %v217, 0
    %v254 = vsel %vm249, %v218, 0
    %v257 = vsel %vm249, %v219, 0
    %v260 = vsel %vm249, %v220, 0
    %v263 = vsel %vm249, %v221, 0
    %v266 = vsel %vm249, %v222, 0
    %v269 = vsel %vm249, %v223, 0
    %v272 = vsel %vm249, %v224, 0
    %v275 = vsel %vm249, %v225, 0
    %v278 = vsel %vm249, %v226, 0
    %v281 = vsel %vm249, %v227, 0
    %v284 = vsel %vm249, %v228, 0
    %v287 = vsel %vm249, %v229, 0
    %v290 = vsel %vm249, %v230, 0
    %v293 = vsel %vm249, %v231, 0
    %v296 = vsel %vm249, %v232, 0
    %v299 = vsel %vm249, %v233, 0
    %v302 = vsel %vm249, %v234, 0
    %v305 = vsel %vm249, %v235, 0
    %v308 = vsel %vm249, %v236, 0
    %v311 = vsel %vm249, %v237, 0
    %v314 = vsel %vm249, %v238, 0
    %v317 = vsel %vm249, %v239, 0
    %v320 = vsel %vm249, %v240, 0
    %v323 = vsel %vm249, %v241, 0
    %v326 = vsel %vm249, %v242, 0
    %v329 = vsel %vm249, %v243, 0
    %v332 = vsel %vm249, %v244, 0
    %v335 = vsel %vm249, %v245, 0
    %v338 = vsel %vm249, %v246, 0
    %v341 = vsel %vm249, %v247, 0
    %v344 = vsel %vm249, %v248, 0
    %346 = vmatprep.subr.mxu0 0.0
    %347 = vmatpush1.msra.mxu0 0.0
    %348 = vmatprep.subr.mxu0 0.0
    %349 = vmatpush1.msra.mxu0 0.0
    %350 = vmatprep.subr.mxu0 0.0
    %351 = vmatpush1.msra.mxu0 0.0
    %352 = vmatprep.subr.mxu0 0.0
    %353 = vmatpush1.msra.mxu0 0.0
    %354 = vmatprep.subr.mxu0 0.0
    %355 = vmatpush1.msra.mxu0 0.0
    %356 = vmatprep.subr.mxu0 0.0
    %357 = vmatpush1.msra.mxu0 0.0
    %358 = vmatprep.subr.mxu0 0.0
    %359 = vmatpush1.msra.mxu0 0.0
    %360 = vmatprep.subr.mxu0 0.0
    %361 = vmatpush1.msra.mxu0 0.0
    %362 = vmatprep.subr.mxu0 0.0
    %v363 = vand.u32 %v54, 4294901760
    %364 = vmatpush1.msra.mxu0 %v363
    %365 = vmatprep.subr.mxu0 0.0
    %v366 = vand.u32 %v53, 4294901760
    %367 = vmatpush1.msra.mxu0 %v366
    %368 = vmatprep.subr.mxu0 0.0
    %v369 = vand.u32 %v52, 4294901760
    %370 = vmatpush1.msra.mxu0 %v369
    %371 = vmatprep.subr.mxu0 0.0
    %v372 = vand.u32 %v51, 4294901760
    %373 = vmatpush1.msra.mxu0 %v372
    %374 = vmatprep.subr.mxu0 0.0
    %v375 = vand.u32 %v50, 4294901760
    %376 = vmatpush1.msra.mxu0 %v375
    %377 = vmatprep.subr.mxu0 0.0
    %v378 = vand.u32 %v49, 4294901760
    %379 = vmatpush1.msra.mxu0 %v378
    %380 = vmatprep.subr.mxu0 0.0
    %v381 = vand.u32 %v48, 4294901760
    %382 = vmatpush1.msra.mxu0 %v381
    %383 = vmatprep.subr.mxu0 0.0
    %v384 = vand.u32 %v47, 4294901760
    %385 = vmatpush1.msra.mxu0 %v384
    %386 = vmatprep.subr.mxu0 0.0
    %387 = vmatpush2.msra.mxu0 0.0
    %388 = vmatprep.subr.mxu0 0.0
    %389 = vmatpush2.msra.mxu0 0.0
    %390 = vmatprep.subr.mxu0 0.0
    %391 = vmatpush2.msra.mxu0 0.0
    %392 = vmatprep.subr.mxu0 0.0
    %393 = vmatpush2.msra.mxu0 0.0
    %394 = vmatprep.subr.mxu0 0.0
    %395 = vmatpush2.msra.mxu0 0.0
    %396 = vmatprep.subr.mxu0 0.0
    %397 = vmatpush2.msra.mxu0 0.0
    %398 = vmatprep.subr.mxu0 0.0
    %399 = vmatpush2.msra.mxu0 0.0
    %400 = vmatprep.subr.mxu0 0.0
    %401 = vmatpush2.msra.mxu0 0.0
    %402 = vmatprep.subr.mxu0 0.0
    %403 = vmatpush2.msra.mxu0 0.0
    %404 = vmatprep.subr.mxu0 0.0
    %405 = vmatpush2.msra.mxu0 0.0
    %406 = vmatprep.subr.mxu0 0.0
    %407 = vmatpush2.msra.mxu0 0.0
    %408 = vmatprep.subr.mxu0 0.0
    %409 = vmatpush2.msra.mxu0 0.0
    %410 = vmatprep.subr.mxu0 0.0
    %411 = vmatpush2.msra.mxu0 0.0
    %412 = vmatprep.subr.mxu0 0.0
    %413 = vmatpush2.msra.mxu0 0.0
    %414 = vmatprep.subr.mxu0 0.0
    %415 = vmatpush2.msra.mxu0 0.0
    %416 = vmatprep.subr.mxu0 0.0
    %417 = vmatpush2.msra.mxu0 0.0
    %418 = vmatprep.mubr.f32.mxu0 0.0
    %v419 = vand.u32 %v251, 4294901760
    %v420 = vsub.f32 %v251, %v419
    %v421 = vand.u32 %v420, 4294901760
    %v422 = vsub.f32 %v420, %v421
    %v423 = vand.u32 %v422, 4294901760
    %424 = vmatmul.mubr.f32.gmra.mxu0 %v423
    %v425 = vpop.f32.mrf.mxu0
    %v426 = vadd.f32 0.0, %v425
    %v427 = vpop.f32.mrf.mxu0
    %428 = vmatprep.mubr.f32.mxu0 0.0
    %v429 = vand.u32 %v254, 4294901760
    %v430 = vsub.f32 %v254, %v429
    %v431 = vand.u32 %v430, 4294901760
    %v432 = vsub.f32 %v430, %v431
    %v433 = vand.u32 %v432, 4294901760
    %434 = vmatmul.mubr.f32.gmra.mxu0 %v433
    %v435 = vpop.f32.mrf.mxu0
    %v436 = vadd.f32 0.0, %v435
    %v437 = vpop.f32.mrf.mxu0
    %438 = vmatprep.mubr.f32.mxu0 0.0
    %v439 = vand.u32 %v257, 4294901760
    %v440 = vsub.f32 %v257, %v439
    %v441 = vand.u32 %v440, 4294901760
    %v442 = vsub.f32 %v440, %v441
    %v443 = vand.u32 %v442, 4294901760
    %444 = vmatmul.mubr.f32.gmra.mxu0 %v443
    %v445 = vpop.f32.mrf.mxu0
    %v446 = vadd.f32 0.0, %v445
    %v447 = vpop.f32.mrf.mxu0
    %448 = vmatprep.mubr.f32.mxu0 0.0
    %v449 = vand.u32 %v260, 4294901760
    %v450 = vsub.f32 %v260, %v449
    %v451 = vand.u32 %v450, 4294901760
    %v452 = vsub.f32 %v450, %v451
    %v453 = vand.u32 %v452, 4294901760
    %454 = vmatmul.mubr.f32.gmra.mxu0 %v453
    %v455 = vpop.f32.mrf.mxu0
    %v456 = vadd.f32 0.0, %v455
    %v457 = vpop.f32.mrf.mxu0
    %458 = vmatprep.mubr.f32.mxu0 0.0
    %v459 = vand.u32 %v263, 4294901760
    %v460 = vsub.f32 %v263, %v459
    %v461 = vand.u32 %v460, 4294901760
    %v462 = vsub.f32 %v460, %v461
    %v463 = vand.u32 %v462, 4294901760
    %464 = vmatmul.mubr.f32.gmra.mxu0 %v463
    %v465 = vpop.f32.mrf.mxu0
    %v466 = vadd.f32 0.0, %v465
    %v467 = vpop.f32.mrf.mxu0
    %468 = vmatprep.mubr.f32.mxu0 0.0
    %v469 = vand.u32 %v266, 4294901760
    %v470 = vsub.f32 %v266, %v469
    %v471 = vand.u32 %v470, 4294901760
    %v472 = vsub.f32 %v470, %v471
    %v473 = vand.u32 %v472, 4294901760
    %474 = vmatmul.mubr.f32.gmra.mxu0 %v473
    %v475 = vpop.f32.mrf.mxu0
    %v476 = vadd.f32 0.0, %v475
    %v477 = vpop.f32.mrf.mxu0
    %478 = vmatprep.mubr.f32.mxu0 0.0
    %v479 = vand.u32 %v269, 4294901760
    %v480 = vsub.f32 %v269, %v479
    %v481 = vand.u32 %v480, 4294901760
    %v482 = vsub.f32 %v480, %v481
    %v483 = vand.u32 %v482, 4294901760
    %484 = vmatmul.mubr.f32.gmra.mxu0 %v483
    %v485 = vpop.f32.mrf.mxu0
    %v486 = vadd.f32 0.0, %v485
    %v487 = vpop.f32.mrf.mxu0
    %488 = vmatprep.mubr.f32.mxu0 0.0
    %v489 = vand.u32 %v272, 4294901760
    %v490 = vsub.f32 %v272, %v489
    %v491 = vand.u32 %v490, 4294901760
    %v492 = vsub.f32 %v490, %v491
    %v493 = vand.u32 %v492, 4294901760
    %494 = vmatmul.mubr.f32.gmra.mxu0 %v493
    %v495 = vpop.f32.mrf.mxu0
    %v496 = vadd.f32 0.0, %v495
    %v497 = vpop.f32.mrf.mxu0
    %498 = vmatprep.mubr.f32.mxu0 0.0
    %v499 = vand.u32 %v275, 4294901760
    %v500 = vsub.f32 %v275, %v499
    %v501 = vand.u32 %v500, 4294901760
    %v502 = vsub.f32 %v500, %v501
    %v503 = vand.u32 %v502, 4294901760
    %504 = vmatmul.mubr.f32.gmra.mxu0 %v503
    %v505 = vpop.f32.mrf.mxu0
    %v506 = vadd.f32 0.0, %v505
    %v507 = vpop.f32.mrf.mxu0
    %508 = vmatprep.mubr.f32.mxu0 0.0
    %v509 = vand.u32 %v278, 4294901760
    %v510 = vsub.f32 %v278, %v509
    %v511 = vand.u32 %v510, 4294901760
    %v512 = vsub.f32 %v510, %v511
    %v513 = vand.u32 %v512, 4294901760
    %514 = vmatmul.mubr.f32.gmra.mxu0 %v513
    %v515 = vpop.f32.mrf.mxu0
    %v516 = vadd.f32 0.0, %v515
    %v517 = vpop.f32.mrf.mxu0
    %518 = vmatprep.mubr.f32.mxu0 0.0
    %v519 = vand.u32 %v281, 4294901760
    %v520 = vsub.f32 %v281, %v519
    %v521 = vand.u32 %v520, 4294901760
    %v522 = vsub.f32 %v520, %v521
    %v523 = vand.u32 %v522, 4294901760
    %524 = vmatmul.mubr.f32.gmra.mxu0 %v523
    %v525 = vpop.f32.mrf.mxu0
    %v526 = vadd.f32 0.0, %v525
    %v527 = vpop.f32.mrf.mxu0
    %528 = vmatprep.mubr.f32.mxu0 0.0
    %v529 = vand.u32 %v284, 4294901760
    %v530 = vsub.f32 %v284, %v529
    %v531 = vand.u32 %v530, 4294901760
    %v532 = vsub.f32 %v530, %v531
    %v533 = vand.u32 %v532, 4294901760
    %534 = vmatmul.mubr.f32.gmra.mxu0 %v533
    %v535 = vpop.f32.mrf.mxu0
    %v536 = vadd.f32 0.0, %v535
    %v537 = vpop.f32.mrf.mxu0
    %538 = vmatprep.mubr.f32.mxu0 0.0
    %v539 = vand.u32 %v287, 4294901760
    %v540 = vsub.f32 %v287, %v539
    %v541 = vand.u32 %v540, 4294901760
    %v542 = vsub.f32 %v540, %v541
    %v543 = vand.u32 %v542, 4294901760
    %544 = vmatmul.mubr.f32.gmra.mxu0 %v543
    %v545 = vpop.f32.mrf.mxu0
    %v546 = vadd.f32 0.0, %v545
    %v547 = vpop.f32.mrf.mxu0
    %548 = vmatprep.mubr.f32.mxu0 0.0
    %v549 = vand.u32 %v290, 4294901760
    %v550 = vsub.f32 %v290, %v549
    %v551 = vand.u32 %v550, 4294901760
    %v552 = vsub.f32 %v550, %v551
    %v553 = vand.u32 %v552, 4294901760
    %554 = vmatmul.mubr.f32.gmra.mxu0 %v553
    %v555 = vpop.f32.mrf.mxu0
    %v556 = vadd.f32 0.0, %v555
    %v557 = vpop.f32.mrf.mxu0
    %558 = vmatprep.mubr.f32.mxu0 0.0
    %v559 = vand.u32 %v293, 4294901760
    %v560 = vsub.f32 %v293, %v559
    %v561 = vand.u32 %v560, 4294901760
    %v562 = vsub.f32 %v560, %v561
    %v563 = vand.u32 %v562, 4294901760
    %564 = vmatmul.mubr.f32.gmra.mxu0 %v563
    %v565 = vpop.f32.mrf.mxu0
    %v566 = vadd.f32 0.0, %v565
    %v567 = vpop.f32.mrf.mxu0
    %568 = vmatprep.mubr.f32.mxu0 0.0
    %v569 = vand.u32 %v296, 4294901760
    %v570 = vsub.f32 %v296, %v569
    %v571 = vand.u32 %v570, 4294901760
    %v572 = vsub.f32 %v570, %v571
    %v573 = vand.u32 %v572, 4294901760
    %574 = vmatmul.mubr.f32.gmra.mxu0 %v573
    %v575 = vpop.f32.mrf.mxu0
    %v576 = vadd.f32 0.0, %v575
    %v577 = vpop.f32.mrf.mxu0
    %578 = vmatprep.mubr.f32.mxu0 0.0
    %v579 = vand.u32 %v299, 4294901760
    %v580 = vsub.f32 %v299, %v579
    %v581 = vand.u32 %v580, 4294901760
    %v582 = vsub.f32 %v580, %v581
    %v583 = vand.u32 %v582, 4294901760
    %584 = vmatmul.mubr.f32.gmra.mxu0 %v583
    %v585 = vpop.f32.mrf.mxu0
    %v586 = vadd.f32 0.0, %v585
    %v587 = vpop.f32.mrf.mxu0
    %588 = vmatprep.mubr.f32.mxu0 0.0
    %v589 = vand.u32 %v302, 4294901760
    %v590 = vsub.f32 %v302, %v589
    %v591 = vand.u32 %v590, 4294901760
    %v592 = vsub.f32 %v590, %v591
    %v593 = vand.u32 %v592, 4294901760
    %594 = vmatmul.mubr.f32.gmra.mxu0 %v593
    %v595 = vpop.f32.mrf.mxu0
    %v596 = vadd.f32 0.0, %v595
    %v597 = vpop.f32.mrf.mxu0
    %598 = vmatprep.mubr.f32.mxu0 0.0
    %v599 = vand.u32 %v305, 4294901760
    %v600 = vsub.f32 %v305, %v599
    %v601 = vand.u32 %v600, 4294901760
    %v602 = vsub.f32 %v600, %v601
    %v603 = vand.u32 %v602, 4294901760
    %604 = vmatmul.mubr.f32.gmra.mxu0 %v603
    %v605 = vpop.f32.mrf.mxu0
    %v606 = vadd.f32 0.0, %v605
    %v607 = vpop.f32.mrf.mxu0
    %608 = vmatprep.mubr.f32.mxu0 0.0
    %v609 = vand.u32 %v308, 4294901760
    %v610 = vsub.f32 %v308, %v609
    %v611 = vand.u32 %v610, 4294901760
    %v612 = vsub.f32 %v610, %v611
    %v613 = vand.u32 %v612, 4294901760
    %614 = vmatmul.mubr.f32.gmra.mxu0 %v613
    %v615 = vpop.f32.mrf.mxu0
    %v616 = vadd.f32 0.0, %v615
    %v617 = vpop.f32.mrf.mxu0
    %618 = vmatprep.mubr.f32.mxu0 0.0
    %v619 = vand.u32 %v311, 4294901760
    %v620 = vsub.f32 %v311, %v619
    %v621 = vand.u32 %v620, 4294901760
    %v622 = vsub.f32 %v620, %v621
    %v623 = vand.u32 %v622, 4294901760
    %624 = vmatmul.mubr.f32.gmra.mxu0 %v623
    %v625 = vpop.f32.mrf.mxu0
    %v626 = vadd.f32 0.0, %v625
    %v627 = vpop.f32.mrf.mxu0
    %628 = vmatprep.mubr.f32.mxu0 0.0
    %v629 = vand.u32 %v314, 4294901760
    %v630 = vsub.f32 %v314, %v629
    %v631 = vand.u32 %v630, 4294901760
    %v632 = vsub.f32 %v630, %v631
    %v633 = vand.u32 %v632, 4294901760
    %634 = vmatmul.mubr.f32.gmra.mxu0 %v633
    %v635 = vpop.f32.mrf.mxu0
    %v636 = vadd.f32 0.0, %v635
    %v637 = vpop.f32.mrf.mxu0
    %638 = vmatprep.mubr.f32.mxu0 0.0
    %v639 = vand.u32 %v317, 4294901760
    %v640 = vsub.f32 %v317, %v639
    %v641 = vand.u32 %v640, 4294901760
    %v642 = vsub.f32 %v640, %v641
    %v643 = vand.u32 %v642, 4294901760
    %644 = vmatmul.mubr.f32.gmra.mxu0 %v643
    %v645 = vpop.f32.mrf.mxu0
    %v646 = vadd.f32 0.0, %v645
    %v647 = vpop.f32.mrf.mxu0
    %648 = vmatprep.mubr.f32.mxu0 0.0
    %v649 = vand.u32 %v320, 4294901760
    %v650 = vsub.f32 %v320, %v649
    %v651 = vand.u32 %v650, 4294901760
    %v652 = vsub.f32 %v650, %v651
    %v653 = vand.u32 %v652, 4294901760
    %654 = vmatmul.mubr.f32.gmra.mxu0 %v653
    %v655 = vpop.f32.mrf.mxu0
    %v656 = vadd.f32 0.0, %v655
    %v657 = vpop.f32.mrf.mxu0
    %658 = vmatprep.mubr.f32.mxu0 0.0
    %v659 = vand.u32 %v323, 4294901760
    %v660 = vsub.f32 %v323, %v659
    %v661 = vand.u32 %v660, 4294901760
    %v662 = vsub.f32 %v660, %v661
    %v663 = vand.u32 %v662, 4294901760
    %664 = vmatmul.mubr.f32.gmra.mxu0 %v663
    %v665 = vpop.f32.mrf.mxu0
    %v666 = vadd.f32 0.0, %v665
    %v667 = vpop.f32.mrf.mxu0
    %668 = vmatprep.mubr.f32.mxu0 0.0
    %v669 = vand.u32 %v326, 4294901760
    %v670 = vsub.f32 %v326, %v669
    %v671 = vand.u32 %v670, 4294901760
    %v672 = vsub.f32 %v670, %v671
    %v673 = vand.u32 %v672, 4294901760
    %674 = vmatmul.mubr.f32.gmra.mxu0 %v673
    %v675 = vpop.f32.mrf.mxu0
    %v676 = vadd.f32 0.0, %v675
    %v677 = vpop.f32.mrf.mxu0
    %678 = vmatprep.mubr.f32.mxu0 0.0
    %v679 = vand.u32 %v329, 4294901760
    %v680 = vsub.f32 %v329, %v679
    %v681 = vand.u32 %v680, 4294901760
    %v682 = vsub.f32 %v680, %v681
    %v683 = vand.u32 %v682, 4294901760
    %684 = vmatmul.mubr.f32.gmra.mxu0 %v683
    %v685 = vpop.f32.mrf.mxu0
    %v686 = vadd.f32 0.0, %v685
    %v687 = vpop.f32.mrf.mxu0
    %688 = vmatprep.mubr.f32.mxu0 0.0
    %v689 = vand.u32 %v332, 4294901760
    %v690 = vsub.f32 %v332, %v689
    %v691 = vand.u32 %v690, 4294901760
    %v692 = vsub.f32 %v690, %v691
    %v693 = vand.u32 %v692, 4294901760
    %694 = vmatmul.mubr.f32.gmra.mxu0 %v693
    %v695 = vpop.f32.mrf.mxu0
    %v696 = vadd.f32 0.0, %v695
    %v697 = vpop.f32.mrf.mxu0
    %698 = vmatprep.mubr.f32.mxu0 0.0
    %v699 = vand.u32 %v335, 4294901760
    %v700 = vsub.f32 %v335, %v699
    %v701 = vand.u32 %v700, 4294901760
    %v702 = vsub.f32 %v700, %v701
    %v703 = vand.u32 %v702, 4294901760
    %704 = vmatmul.mubr.f32.gmra.mxu0 %v703
    %v705 = vpop.f32.mrf.mxu0
    %v706 = vadd.f32 0.0, %v705
    %v707 = vpop.f32.mrf.mxu0
    %708 = vmatprep.mubr.f32.mxu0 0.0
    %v709 = vand.u32 %v338, 4294901760
    %v710 = vsub.f32 %v338, %v709
    %v711 = vand.u32 %v710, 4294901760
    %v712 = vsub.f32 %v710, %v711
    %v713 = vand.u32 %v712, 4294901760
    %714 = vmatmul.mubr.f32.gmra.mxu0 %v713
    %v715 = vpop.f32.mrf.mxu0
    %v716 = vadd.f32 0.0, %v715
    %v717 = vpop.f32.mrf.mxu0
    %718 = vmatprep.mubr.f32.mxu0 0.0
    %v719 = vand.u32 %v341, 4294901760
    %v720 = vsub.f32 %v341, %v719
    %v721 = vand.u32 %v720, 4294901760
    %v722 = vsub.f32 %v720, %v721
    %v723 = vand.u32 %v722, 4294901760
    %724 = vmatmul.mubr.f32.gmra.mxu0 %v723
    %v725 = vpop.f32.mrf.mxu0
    %v726 = vadd.f32 0.0, %v725
    %v727 = vpop.f32.mrf.mxu0
    %728 = vmatprep.mubr.f32.mxu0 0.0
    %v729 = vand.u32 %v344, 4294901760
    %v730 = vsub.f32 %v344, %v729
    %v731 = vand.u32 %v730, 4294901760
    %v732 = vsub.f32 %v730, %v731
    %v733 = vand.u32 %v732, 4294901760
    %734 = vmatmul.mubr.f32.gmra.mxu0 %v733
    %v735 = vpop.f32.mrf.mxu0
    %v736 = vadd.f32 0.0, %v735
    %v737 = vpop.f32.mrf.mxu0
    %738 = vdwg.mxu0
    %739 = vmatprep.subr.mxu0 0.0
    %740 = vmatpush1.msra.mxu0 0.0
    %741 = vmatprep.subr.mxu0 0.0
    %742 = vmatpush1.msra.mxu0 0.0
    %743 = vmatprep.subr.mxu0 0.0
    %744 = vmatpush1.msra.mxu0 0.0
    %745 = vmatprep.subr.mxu0 0.0
    %746 = vmatpush1.msra.mxu0 0.0
    %747 = vmatprep.subr.mxu0 0.0
    %748 = vmatpush1.msra.mxu0 0.0
    %749 = vmatprep.subr.mxu0 0.0
    %750 = vmatpush1.msra.mxu0 0.0
    %751 = vmatprep.subr.mxu0 0.0
    %752 = vmatpush1.msra.mxu0 0.0
    %753 = vmatprep.subr.mxu0 0.0
    %754 = vmatpush1.msra.mxu0 0.0
    %755 = vmatprep.subr.mxu0 0.0
    %v756 = vand.u32 %v54, 4294901760
    %v757 = vsub.f32 %v54, %v756
    %v758 = vand.u32 %v757, 4294901760
    %v759 = vsub.f32 %v757, %v758
    %v760 = vand.u32 %v759, 4294901760
    %761 = vmatpush1.msra.mxu0 %v760
    %762 = vmatprep.subr.mxu0 0.0
    %v763 = vand.u32 %v53, 4294901760
    %v764 = vsub.f32 %v53, %v763
    %v765 = vand.u32 %v764, 4294901760
    %v766 = vsub.f32 %v764, %v765
    %v767 = vand.u32 %v766, 4294901760
    %768 = vmatpush1.msra.mxu0 %v767
    %769 = vmatprep.subr.mxu0 0.0
    %v770 = vand.u32 %v52, 4294901760
    %v771 = vsub.f32 %v52, %v770
    %v772 = vand.u32 %v771, 4294901760
    %v773 = vsub.f32 %v771, %v772
    %v774 = vand.u32 %v773, 4294901760
    %775 = vmatpush1.msra.mxu0 %v774
    %776 = vmatprep.subr.mxu0 0.0
    %v777 = vand.u32 %v51, 4294901760
    %v778 = vsub.f32 %v51, %v777
    %v779 = vand.u32 %v778, 4294901760
    %v780 = vsub.f32 %v778, %v779
    %v781 = vand.u32 %v780, 4294901760
    %782 = vmatpush1.msra.mxu0 %v781
    %783 = vmatprep.subr.mxu0 0.0
    %v784 = vand.u32 %v50, 4294901760
    %v785 = vsub.f32 %v50, %v784
    %v786 = vand.u32 %v785, 4294901760
    %v787 = vsub.f32 %v785, %v786
    %v788 = vand.u32 %v787, 4294901760
    %789 = vmatpush1.msra.mxu0 %v788
    %790 = vmatprep.subr.mxu0 0.0
    %v791 = vand.u32 %v49, 4294901760
    %v792 = vsub.f32 %v49, %v791
    %v793 = vand.u32 %v792, 4294901760
    %v794 = vsub.f32 %v792, %v793
    %v795 = vand.u32 %v794, 4294901760
    %796 = vmatpush1.msra.mxu0 %v795
    %797 = vmatprep.subr.mxu0 0.0
    %v798 = vand.u32 %v48, 4294901760
    %v799 = vsub.f32 %v48, %v798
    %v800 = vand.u32 %v799, 4294901760
    %v801 = vsub.f32 %v799, %v800
    %v802 = vand.u32 %v801, 4294901760
    %803 = vmatpush1.msra.mxu0 %v802
    %804 = vmatprep.subr.mxu0 0.0
    %v805 = vand.u32 %v47, 4294901760
    %v806 = vsub.f32 %v47, %v805
    %v807 = vand.u32 %v806, 4294901760
    %v808 = vsub.f32 %v806, %v807
    %v809 = vand.u32 %v808, 4294901760
    %810 = vmatpush1.msra.mxu0 %v809
    %811 = vmatprep.subr.mxu0 0.0
    %812 = vmatpush2.msra.mxu0 0.0
    %813 = vmatprep.subr.mxu0 0.0
    %814 = vmatpush2.msra.mxu0 0.0
    %815 = vmatprep.subr.mxu0 0.0
    %816 = vmatpush2.msra.mxu0 0.0
    %817 = vmatprep.subr.mxu0 0.0
    %818 = vmatpush2.msra.mxu0 0.0
    %819 = vmatprep.subr.mxu0 0.0
    %820 = vmatpush2.msra.mxu0 0.0
    %821 = vmatprep.subr.mxu0 0.0
    %822 = vmatpush2.msra.mxu0 0.0
    %823 = vmatprep.subr.mxu0 0.0
    %824 = vmatpush2.msra.mxu0 0.0
    %825 = vmatprep.subr.mxu0 0.0
    %826 = vmatpush2.msra.mxu0 0.0
    %827 = vmatprep.subr.mxu0 0.0
    %828 = vmatpush2.msra.mxu0 0.0
    %829 = vmatprep.subr.mxu0 0.0
    %830 = vmatpush2.msra.mxu0 0.0
    %831 = vmatprep.subr.mxu0 0.0
    %832 = vmatpush2.msra.mxu0 0.0
    %833 = vmatprep.subr.mxu0 0.0
    %834 = vmatpush2.msra.mxu0 0.0
    %835 = vmatprep.subr.mxu0 0.0
    %836 = vmatpush2.msra.mxu0 0.0
    %837 = vmatprep.subr.mxu0 0.0
    %838 = vmatpush2.msra.mxu0 0.0
    %839 = vmatprep.subr.mxu0 0.0
    %840 = vmatpush2.msra.mxu0 0.0
    %841 = vmatprep.subr.mxu0 0.0
    %842 = vmatpush2.msra.mxu0 0.0
    %843 = vmatprep.mubr.f32.mxu0 0.0
    %v844 = vand.u32 %v251, 4294901760
    %845 = vmatmul.mubr.f32.gmra.mxu0 %v844
    %v846 = vpop.f32.mrf.mxu0
    %v847 = vadd.f32 %v426, %v846
    %v848 = vpop.f32.mrf.mxu0
    %849 = vmatprep.mubr.f32.mxu0 0.0
    %v850 = vand.u32 %v254, 4294901760
    %851 = vmatmul.mubr.f32.gmra.mxu0 %v850
    %v852 = vpop.f32.mrf.mxu0
    %v853 = vadd.f32 %v436, %v852
    %v854 = vpop.f32.mrf.mxu0
    %855 = vmatprep.mubr.f32.mxu0 0.0
    %v856 = vand.u32 %v257, 4294901760
    %857 = vmatmul.mubr.f32.gmra.mxu0 %v856
    %v858 = vpop.f32.mrf.mxu0
    %v859 = vadd.f32 %v446, %v858
    %v860 = vpop.f32.mrf.mxu0
    %861 = vmatprep.mubr.f32.mxu0 0.0
    %v862 = vand.u32 %v260, 4294901760
    %863 = vmatmul.mubr.f32.gmra.mxu0 %v862
    %v864 = vpop.f32.mrf.mxu0
    %v865 = vadd.f32 %v456, %v864
    %v866 = vpop.f32.mrf.mxu0
    %867 = vmatprep.mubr.f32.mxu0 0.0
    %v868 = vand.u32 %v263, 4294901760
    %869 = vmatmul.mubr.f32.gmra.mxu0 %v868
    %v870 = vpop.f32.mrf.mxu0
    %v871 = vadd.f32 %v466, %v870
    %v872 = vpop.f32.mrf.mxu0
    %873 = vmatprep.mubr.f32.mxu0 0.0
    %v874 = vand.u32 %v266, 4294901760
    %875 = vmatmul.mubr.f32.gmra.mxu0 %v874
    %v876 = vpop.f32.mrf.mxu0
    %v877 = vadd.f32 %v476, %v876
    %v878 = vpop.f32.mrf.mxu0
    %879 = vmatprep.mubr.f32.mxu0 0.0
    %v880 = vand.u32 %v269, 4294901760
    %881 = vmatmul.mubr.f32.gmra.mxu0 %v880
    %v882 = vpop.f32.mrf.mxu0
    %v883 = vadd.f32 %v486, %v882
    %v884 = vpop.f32.mrf.mxu0
    %885 = vmatprep.mubr.f32.mxu0 0.0
    %v886 = vand.u32 %v272, 4294901760
    %887 = vmatmul.mubr.f32.gmra.mxu0 %v886
    %v888 = vpop.f32.mrf.mxu0
    %v889 = vadd.f32 %v496, %v888
    %v890 = vpop.f32.mrf.mxu0
    %891 = vmatprep.mubr.f32.mxu0 0.0
    %v892 = vand.u32 %v275, 4294901760
    %893 = vmatmul.mubr.f32.gmra.mxu0 %v892
    %v894 = vpop.f32.mrf.mxu0
    %v895 = vadd.f32 %v506, %v894
    %v896 = vpop.f32.mrf.mxu0
    %897 = vmatprep.mubr.f32.mxu0 0.0
    %v898 = vand.u32 %v278, 4294901760
    %899 = vmatmul.mubr.f32.gmra.mxu0 %v898
    %v900 = vpop.f32.mrf.mxu0
    %v901 = vadd.f32 %v516, %v900
    %v902 = vpop.f32.mrf.mxu0
    %903 = vmatprep.mubr.f32.mxu0 0.0
    %v904 = vand.u32 %v281, 4294901760
    %905 = vmatmul.mubr.f32.gmra.mxu0 %v904
    %v906 = vpop.f32.mrf.mxu0
    %v907 = vadd.f32 %v526, %v906
    %v908 = vpop.f32.mrf.mxu0
    %909 = vmatprep.mubr.f32.mxu0 0.0
    %v910 = vand.u32 %v284, 4294901760
    %911 = vmatmul.mubr.f32.gmra.mxu0 %v910
    %v912 = vpop.f32.mrf.mxu0
    %v913 = vadd.f32 %v536, %v912
    %v914 = vpop.f32.mrf.mxu0
    %915 = vmatprep.mubr.f32.mxu0 0.0
    %v916 = vand.u32 %v287, 4294901760
    %917 = vmatmul.mubr.f32.gmra.mxu0 %v916
    %v918 = vpop.f32.mrf.mxu0
    %v919 = vadd.f32 %v546, %v918
    %v920 = vpop.f32.mrf.mxu0
    %921 = vmatprep.mubr.f32.mxu0 0.0
    %v922 = vand.u32 %v290, 4294901760
    %923 = vmatmul.mubr.f32.gmra.mxu0 %v922
    %v924 = vpop.f32.mrf.mxu0
    %v925 = vadd.f32 %v556, %v924
    %v926 = vpop.f32.mrf.mxu0
    %927 = vmatprep.mubr.f32.mxu0 0.0
    %v928 = vand.u32 %v293, 4294901760
    %929 = vmatmul.mubr.f32.gmra.mxu0 %v928
    %v930 = vpop.f32.mrf.mxu0
    %v931 = vadd.f32 %v566, %v930
    %v932 = vpop.f32.mrf.mxu0
    %933 = vmatprep.mubr.f32.mxu0 0.0
    %v934 = vand.u32 %v296, 4294901760
    %935 = vmatmul.mubr.f32.gmra.mxu0 %v934
    %v936 = vpop.f32.mrf.mxu0
    %v937 = vadd.f32 %v576, %v936
    %v938 = vpop.f32.mrf.mxu0
    %939 = vmatprep.mubr.f32.mxu0 0.0
    %v940 = vand.u32 %v299, 4294901760
    %941 = vmatmul.mubr.f32.gmra.mxu0 %v940
    %v942 = vpop.f32.mrf.mxu0
    %v943 = vadd.f32 %v586, %v942
    %v944 = vpop.f32.mrf.mxu0
    %945 = vmatprep.mubr.f32.mxu0 0.0
    %v946 = vand.u32 %v302, 4294901760
    %947 = vmatmul.mubr.f32.gmra.mxu0 %v946
    %v948 = vpop.f32.mrf.mxu0
    %v949 = vadd.f32 %v596, %v948
    %v950 = vpop.f32.mrf.mxu0
    %951 = vmatprep.mubr.f32.mxu0 0.0
    %v952 = vand.u32 %v305, 4294901760
    %953 = vmatmul.mubr.f32.gmra.mxu0 %v952
    %v954 = vpop.f32.mrf.mxu0
    %v955 = vadd.f32 %v606, %v954
    %v956 = vpop.f32.mrf.mxu0
    %957 = vmatprep.mubr.f32.mxu0 0.0
    %v958 = vand.u32 %v308, 4294901760
    %959 = vmatmul.mubr.f32.gmra.mxu0 %v958
    %v960 = vpop.f32.mrf.mxu0
    %v961 = vadd.f32 %v616, %v960
    %v962 = vpop.f32.mrf.mxu0
    %963 = vmatprep.mubr.f32.mxu0 0.0
    %v964 = vand.u32 %v311, 4294901760
    %965 = vmatmul.mubr.f32.gmra.mxu0 %v964
    %v966 = vpop.f32.mrf.mxu0
    %v967 = vadd.f32 %v626, %v966
    %v968 = vpop.f32.mrf.mxu0
    %969 = vmatprep.mubr.f32.mxu0 0.0
    %v970 = vand.u32 %v314, 4294901760
    %971 = vmatmul.mubr.f32.gmra.mxu0 %v970
    %v972 = vpop.f32.mrf.mxu0
    %v973 = vadd.f32 %v636, %v972
    %v974 = vpop.f32.mrf.mxu0
    %975 = vmatprep.mubr.f32.mxu0 0.0
    %v976 = vand.u32 %v317, 4294901760
    %977 = vmatmul.mubr.f32.gmra.mxu0 %v976
    %v978 = vpop.f32.mrf.mxu0
    %v979 = vadd.f32 %v646, %v978
    %v980 = vpop.f32.mrf.mxu0
    %981 = vmatprep.mubr.f32.mxu0 0.0
    %v982 = vand.u32 %v320, 4294901760
    %983 = vmatmul.mubr.f32.gmra.mxu0 %v982
    %v984 = vpop.f32.mrf.mxu0
    %v985 = vadd.f32 %v656, %v984
    %v986 = vpop.f32.mrf.mxu0
    %987 = vmatprep.mubr.f32.mxu0 0.0
    %v988 = vand.u32 %v323, 4294901760
    %989 = vmatmul.mubr.f32.gmra.mxu0 %v988
    %v990 = vpop.f32.mrf.mxu0
    %v991 = vadd.f32 %v666, %v990
    %v992 = vpop.f32.mrf.mxu0
    %993 = vmatprep.mubr.f32.mxu0 0.0
    %v994 = vand.u32 %v326, 4294901760
    %995 = vmatmul.mubr.f32.gmra.mxu0 %v994
    %v996 = vpop.f32.mrf.mxu0
    %v997 = vadd.f32 %v676, %v996
    %v998 = vpop.f32.mrf.mxu0
    %999 = vmatprep.mubr.f32.mxu0 0.0
    %v1000 = vand.u32 %v329, 4294901760
    %1001 = vmatmul.mubr.f32.gmra.mxu0 %v1000
    %v1002 = vpop.f32.mrf.mxu0
    %v1003 = vadd.f32 %v686, %v1002
    %v1004 = vpop.f32.mrf.mxu0
    %1005 = vmatprep.mubr.f32.mxu0 0.0
    %v1006 = vand.u32 %v332, 4294901760
    %1007 = vmatmul.mubr.f32.gmra.mxu0 %v1006
    %v1008 = vpop.f32.mrf.mxu0
    %v1009 = vadd.f32 %v696, %v1008
    %v1010 = vpop.f32.mrf.mxu0
    %1011 = vmatprep.mubr.f32.mxu0 0.0
    %v1012 = vand.u32 %v335, 4294901760
    %1013 = vmatmul.mubr.f32.gmra.mxu0 %v1012
    %v1014 = vpop.f32.mrf.mxu0
    %v1015 = vadd.f32 %v706, %v1014
    %v1016 = vpop.f32.mrf.mxu0
    %1017 = vmatprep.mubr.f32.mxu0 0.0
    %v1018 = vand.u32 %v338, 4294901760
    %1019 = vmatmul.mubr.f32.gmra.mxu0 %v1018
    %v1020 = vpop.f32.mrf.mxu0
    %v1021 = vadd.f32 %v716, %v1020
    %v1022 = vpop.f32.mrf.mxu0
    %1023 = vmatprep.mubr.f32.mxu0 0.0
    %v1024 = vand.u32 %v341, 4294901760
    %1025 = vmatmul.mubr.f32.gmra.mxu0 %v1024
    %v1026 = vpop.f32.mrf.mxu0
    %v1027 = vadd.f32 %v726, %v1026
    %v1028 = vpop.f32.mrf.mxu0
    %1029 = vmatprep.mubr.f32.mxu0 0.0
    %v1030 = vand.u32 %v344, 4294901760
    %1031 = vmatmul.mubr.f32.gmra.mxu0 %v1030
    %v1032 = vpop.f32.mrf.mxu0
    %v1033 = vadd.f32 %v736, %v1032
    %v1034 = vpop.f32.mrf.mxu0
    %1035 = vdwg.mxu0
    %1036 = vmatprep.subr.mxu0 0.0
    %1037 = vmatpush1.msra.mxu0 0.0
    %1038 = vmatprep.subr.mxu0 0.0
    %1039 = vmatpush1.msra.mxu0 0.0
    %1040 = vmatprep.subr.mxu0 0.0
    %1041 = vmatpush1.msra.mxu0 0.0
    %1042 = vmatprep.subr.mxu0 0.0
    %1043 = vmatpush1.msra.mxu0 0.0
    %1044 = vmatprep.subr.mxu0 0.0
    %1045 = vmatpush1.msra.mxu0 0.0
    %1046 = vmatprep.subr.mxu0 0.0
    %1047 = vmatpush1.msra.mxu0 0.0
    %1048 = vmatprep.subr.mxu0 0.0
    %1049 = vmatpush1.msra.mxu0 0.0
    %1050 = vmatprep.subr.mxu0 0.0
    %1051 = vmatpush1.msra.mxu0 0.0
    %1052 = vmatprep.subr.mxu0 0.0
    %v1053 = vand.u32 %v54, 4294901760
    %v1054 = vsub.f32 %v54, %v1053
    %1055 = vmatpush1.msra.mxu0 %v1054
    %1056 = vmatprep.subr.mxu0 0.0
    %v1057 = vand.u32 %v53, 4294901760
    %v1058 = vsub.f32 %v53, %v1057
    %1059 = vmatpush1.msra.mxu0 %v1058
    %1060 = vmatprep.subr.mxu0 0.0
    %v1061 = vand.u32 %v52, 4294901760
    %v1062 = vsub.f32 %v52, %v1061
    %1063 = vmatpush1.msra.mxu0 %v1062
    %1064 = vmatprep.subr.mxu0 0.0
    %v1065 = vand.u32 %v51, 4294901760
    %v1066 = vsub.f32 %v51, %v1065
    %1067 = vmatpush1.msra.mxu0 %v1066
    %1068 = vmatprep.subr.mxu0 0.0
    %v1069 = vand.u32 %v50, 4294901760
    %v1070 = vsub.f32 %v50, %v1069
    %1071 = vmatpush1.msra.mxu0 %v1070
    %1072 = vmatprep.subr.mxu0 0.0
    %v1073 = vand.u32 %v49, 4294901760
    %v1074 = vsub.f32 %v49, %v1073
    %1075 = vmatpush1.msra.mxu0 %v1074
    %1076 = vmatprep.subr.mxu0 0.0
    %v1077 = vand.u32 %v48, 4294901760
    %v1078 = vsub.f32 %v48, %v1077
    %1079 = vmatpush1.msra.mxu0 %v1078
    %1080 = vmatprep.subr.mxu0 0.0
    %v1081 = vand.u32 %v47, 4294901760
    %v1082 = vsub.f32 %v47, %v1081
    %1083 = vmatpush1.msra.mxu0 %v1082
    %1084 = vmatprep.subr.mxu0 0.0
    %1085 = vmatpush2.msra.mxu0 0.0
    %1086 = vmatprep.subr.mxu0 0.0
    %1087 = vmatpush2.msra.mxu0 0.0
    %1088 = vmatprep.subr.mxu0 0.0
    %1089 = vmatpush2.msra.mxu0 0.0
    %1090 = vmatprep.subr.mxu0 0.0
    %1091 = vmatpush2.msra.mxu0 0.0
    %1092 = vmatprep.subr.mxu0 0.0
    %1093 = vmatpush2.msra.mxu0 0.0
    %1094 = vmatprep.subr.mxu0 0.0
    %1095 = vmatpush2.msra.mxu0 0.0
    %1096 = vmatprep.subr.mxu0 0.0
    %1097 = vmatpush2.msra.mxu0 0.0
    %1098 = vmatprep.subr.mxu0 0.0
    %1099 = vmatpush2.msra.mxu0 0.0
    %1100 = vmatprep.subr.mxu0 0.0
    %1101 = vmatpush2.msra.mxu0 0.0
    %1102 = vmatprep.subr.mxu0 0.0
    %1103 = vmatpush2.msra.mxu0 0.0
    %1104 = vmatprep.subr.mxu0 0.0
    %1105 = vmatpush2.msra.mxu0 0.0
    %1106 = vmatprep.subr.mxu0 0.0
    %1107 = vmatpush2.msra.mxu0 0.0
    %1108 = vmatprep.subr.mxu0 0.0
    %1109 = vmatpush2.msra.mxu0 0.0
    %1110 = vmatprep.subr.mxu0 0.0
    %1111 = vmatpush2.msra.mxu0 0.0
    %1112 = vmatprep.subr.mxu0 0.0
    %1113 = vmatpush2.msra.mxu0 0.0
    %1114 = vmatprep.subr.mxu0 0.0
    %1115 = vmatpush2.msra.mxu0 0.0
    %1116 = vmatprep.mubr.f32.mxu0 0.0
    %v1117 = vand.u32 %v251, 4294901760
    %v1118 = vsub.f32 %v251, %v1117
    %1119 = vmatmul.mubr.f32.gmra.mxu0 %v1118
    %v1120 = vpop.f32.mrf.mxu0
    %v1121 = vadd.f32 %v847, %v1120
    %v1122 = vpop.f32.mrf.mxu0
    %1123 = vmatprep.mubr.f32.mxu0 0.0
    %v1124 = vand.u32 %v254, 4294901760
    %v1125 = vsub.f32 %v254, %v1124
    %1126 = vmatmul.mubr.f32.gmra.mxu0 %v1125
    %v1127 = vpop.f32.mrf.mxu0
    %v1128 = vadd.f32 %v853, %v1127
    %v1129 = vpop.f32.mrf.mxu0
    %1130 = vmatprep.mubr.f32.mxu0 0.0
    %v1131 = vand.u32 %v257, 4294901760
    %v1132 = vsub.f32 %v257, %v1131
    %1133 = vmatmul.mubr.f32.gmra.mxu0 %v1132
    %v1134 = vpop.f32.mrf.mxu0
    %v1135 = vadd.f32 %v859, %v1134
    %v1136 = vpop.f32.mrf.mxu0
    %1137 = vmatprep.mubr.f32.mxu0 0.0
    %v1138 = vand.u32 %v260, 4294901760
    %v1139 = vsub.f32 %v260, %v1138
    %1140 = vmatmul.mubr.f32.gmra.mxu0 %v1139
    %v1141 = vpop.f32.mrf.mxu0
    %v1142 = vadd.f32 %v865, %v1141
    %v1143 = vpop.f32.mrf.mxu0
    %1144 = vmatprep.mubr.f32.mxu0 0.0
    %v1145 = vand.u32 %v263, 4294901760
    %v1146 = vsub.f32 %v263, %v1145
    %1147 = vmatmul.mubr.f32.gmra.mxu0 %v1146
    %v1148 = vpop.f32.mrf.mxu0
    %v1149 = vadd.f32 %v871, %v1148
    %v1150 = vpop.f32.mrf.mxu0
    %1151 = vmatprep.mubr.f32.mxu0 0.0
    %v1152 = vand.u32 %v266, 4294901760
    %v1153 = vsub.f32 %v266, %v1152
    %1154 = vmatmul.mubr.f32.gmra.mxu0 %v1153
    %v1155 = vpop.f32.mrf.mxu0
    %v1156 = vadd.f32 %v877, %v1155
    %v1157 = vpop.f32.mrf.mxu0
    %1158 = vmatprep.mubr.f32.mxu0 0.0
    %v1159 = vand.u32 %v269, 4294901760
    %v1160 = vsub.f32 %v269, %v1159
    %1161 = vmatmul.mubr.f32.gmra.mxu0 %v1160
    %v1162 = vpop.f32.mrf.mxu0
    %v1163 = vadd.f32 %v883, %v1162
    %v1164 = vpop.f32.mrf.mxu0
    %1165 = vmatprep.mubr.f32.mxu0 0.0
    %v1166 = vand.u32 %v272, 4294901760
    %v1167 = vsub.f32 %v272, %v1166
    %1168 = vmatmul.mubr.f32.gmra.mxu0 %v1167
    %v1169 = vpop.f32.mrf.mxu0
    %v1170 = vadd.f32 %v889, %v1169
    %v1171 = vpop.f32.mrf.mxu0
    %1172 = vmatprep.mubr.f32.mxu0 0.0
    %v1173 = vand.u32 %v275, 4294901760
    %v1174 = vsub.f32 %v275, %v1173
    %1175 = vmatmul.mubr.f32.gmra.mxu0 %v1174
    %v1176 = vpop.f32.mrf.mxu0
    %v1177 = vadd.f32 %v895, %v1176
    %v1178 = vpop.f32.mrf.mxu0
    %1179 = vmatprep.mubr.f32.mxu0 0.0
    %v1180 = vand.u32 %v278, 4294901760
    %v1181 = vsub.f32 %v278, %v1180
    %1182 = vmatmul.mubr.f32.gmra.mxu0 %v1181
    %v1183 = vpop.f32.mrf.mxu0
    %v1184 = vadd.f32 %v901, %v1183
    %v1185 = vpop.f32.mrf.mxu0
    %1186 = vmatprep.mubr.f32.mxu0 0.0
    %v1187 = vand.u32 %v281, 4294901760
    %v1188 = vsub.f32 %v281, %v1187
    %1189 = vmatmul.mubr.f32.gmra.mxu0 %v1188
    %v1190 = vpop.f32.mrf.mxu0
    %v1191 = vadd.f32 %v907, %v1190
    %v1192 = vpop.f32.mrf.mxu0
    %1193 = vmatprep.mubr.f32.mxu0 0.0
    %v1194 = vand.u32 %v284, 4294901760
    %v1195 = vsub.f32 %v284, %v1194
    %1196 = vmatmul.mubr.f32.gmra.mxu0 %v1195
    %v1197 = vpop.f32.mrf.mxu0
    %v1198 = vadd.f32 %v913, %v1197
    %v1199 = vpop.f32.mrf.mxu0
    %1200 = vmatprep.mubr.f32.mxu0 0.0
    %v1201 = vand.u32 %v287, 4294901760
    %v1202 = vsub.f32 %v287, %v1201
    %1203 = vmatmul.mubr.f32.gmra.mxu0 %v1202
    %v1204 = vpop.f32.mrf.mxu0
    %v1205 = vadd.f32 %v919, %v1204
    %v1206 = vpop.f32.mrf.mxu0
    %1207 = vmatprep.mubr.f32.mxu0 0.0
    %v1208 = vand.u32 %v290, 4294901760
    %v1209 = vsub.f32 %v290, %v1208
    %1210 = vmatmul.mubr.f32.gmra.mxu0 %v1209
    %v1211 = vpop.f32.mrf.mxu0
    %v1212 = vadd.f32 %v925, %v1211
    %v1213 = vpop.f32.mrf.mxu0
    %1214 = vmatprep.mubr.f32.mxu0 0.0
    %v1215 = vand.u32 %v293, 4294901760
    %v1216 = vsub.f32 %v293, %v1215
    %1217 = vmatmul.mubr.f32.gmra.mxu0 %v1216
    %v1218 = vpop.f32.mrf.mxu0
    %v1219 = vadd.f32 %v931, %v1218
    %v1220 = vpop.f32.mrf.mxu0
    %1221 = vmatprep.mubr.f32.mxu0 0.0
    %v1222 = vand.u32 %v296, 4294901760
    %v1223 = vsub.f32 %v296, %v1222
    %1224 = vmatmul.mubr.f32.gmra.mxu0 %v1223
    %v1225 = vpop.f32.mrf.mxu0
    %v1226 = vadd.f32 %v937, %v1225
    %v1227 = vpop.f32.mrf.mxu0
    %1228 = vmatprep.mubr.f32.mxu0 0.0
    %v1229 = vand.u32 %v299, 4294901760
    %v1230 = vsub.f32 %v299, %v1229
    %1231 = vmatmul.mubr.f32.gmra.mxu0 %v1230
    %v1232 = vpop.f32.mrf.mxu0
    %v1233 = vadd.f32 %v943, %v1232
    %v1234 = vpop.f32.mrf.mxu0
    %1235 = vmatprep.mubr.f32.mxu0 0.0
    %v1236 = vand.u32 %v302, 4294901760
    %v1237 = vsub.f32 %v302, %v1236
    %1238 = vmatmul.mubr.f32.gmra.mxu0 %v1237
    %v1239 = vpop.f32.mrf.mxu0
    %v1240 = vadd.f32 %v949, %v1239
    %v1241 = vpop.f32.mrf.mxu0
    %1242 = vmatprep.mubr.f32.mxu0 0.0
    %v1243 = vand.u32 %v305, 4294901760
    %v1244 = vsub.f32 %v305, %v1243
    %1245 = vmatmul.mubr.f32.gmra.mxu0 %v1244
    %v1246 = vpop.f32.mrf.mxu0
    %v1247 = vadd.f32 %v955, %v1246
    %v1248 = vpop.f32.mrf.mxu0
    %1249 = vmatprep.mubr.f32.mxu0 0.0
    %v1250 = vand.u32 %v308, 4294901760
    %v1251 = vsub.f32 %v308, %v1250
    %1252 = vmatmul.mubr.f32.gmra.mxu0 %v1251
    %v1253 = vpop.f32.mrf.mxu0
    %v1254 = vadd.f32 %v961, %v1253
    %v1255 = vpop.f32.mrf.mxu0
    %1256 = vmatprep.mubr.f32.mxu0 0.0
    %v1257 = vand.u32 %v311, 4294901760
    %v1258 = vsub.f32 %v311, %v1257
    %1259 = vmatmul.mubr.f32.gmra.mxu0 %v1258
    %v1260 = vpop.f32.mrf.mxu0
    %v1261 = vadd.f32 %v967, %v1260
    %v1262 = vpop.f32.mrf.mxu0
    %1263 = vmatprep.mubr.f32.mxu0 0.0
    %v1264 = vand.u32 %v314, 4294901760
    %v1265 = vsub.f32 %v314, %v1264
    %1266 = vmatmul.mubr.f32.gmra.mxu0 %v1265
    %v1267 = vpop.f32.mrf.mxu0
    %v1268 = vadd.f32 %v973, %v1267
    %v1269 = vpop.f32.mrf.mxu0
    %1270 = vmatprep.mubr.f32.mxu0 0.0
    %v1271 = vand.u32 %v317, 4294901760
    %v1272 = vsub.f32 %v317, %v1271
    %1273 = vmatmul.mubr.f32.gmra.mxu0 %v1272
    %v1274 = vpop.f32.mrf.mxu0
    %v1275 = vadd.f32 %v979, %v1274
    %v1276 = vpop.f32.mrf.mxu0
    %1277 = vmatprep.mubr.f32.mxu0 0.0
    %v1278 = vand.u32 %v320, 4294901760
    %v1279 = vsub.f32 %v320, %v1278
    %1280 = vmatmul.mubr.f32.gmra.mxu0 %v1279
    %v1281 = vpop.f32.mrf.mxu0
    %v1282 = vadd.f32 %v985, %v1281
    %v1283 = vpop.f32.mrf.mxu0
    %1284 = vmatprep.mubr.f32.mxu0 0.0
    %v1285 = vand.u32 %v323, 4294901760
    %v1286 = vsub.f32 %v323, %v1285
    %1287 = vmatmul.mubr.f32.gmra.mxu0 %v1286
    %v1288 = vpop.f32.mrf.mxu0
    %v1289 = vadd.f32 %v991, %v1288
    %v1290 = vpop.f32.mrf.mxu0
    %1291 = vmatprep.mubr.f32.mxu0 0.0
    %v1292 = vand.u32 %v326, 4294901760
    %v1293 = vsub.f32 %v326, %v1292
    %1294 = vmatmul.mubr.f32.gmra.mxu0 %v1293
    %v1295 = vpop.f32.mrf.mxu0
    %v1296 = vadd.f32 %v997, %v1295
    %v1297 = vpop.f32.mrf.mxu0
    %1298 = vmatprep.mubr.f32.mxu0 0.0
    %v1299 = vand.u32 %v329, 4294901760
    %v1300 = vsub.f32 %v329, %v1299
    %1301 = vmatmul.mubr.f32.gmra.mxu0 %v1300
    %v1302 = vpop.f32.mrf.mxu0
    %v1303 = vadd.f32 %v1003, %v1302
    %v1304 = vpop.f32.mrf.mxu0
    %1305 = vmatprep.mubr.f32.mxu0 0.0
    %v1306 = vand.u32 %v332, 4294901760
    %v1307 = vsub.f32 %v332, %v1306
    %1308 = vmatmul.mubr.f32.gmra.mxu0 %v1307
    %v1309 = vpop.f32.mrf.mxu0
    %v1310 = vadd.f32 %v1009, %v1309
    %v1311 = vpop.f32.mrf.mxu0
    %1312 = vmatprep.mubr.f32.mxu0 0.0
    %v1313 = vand.u32 %v335, 4294901760
    %v1314 = vsub.f32 %v335, %v1313
    %1315 = vmatmul.mubr.f32.gmra.mxu0 %v1314
    %v1316 = vpop.f32.mrf.mxu0
    %v1317 = vadd.f32 %v1015, %v1316
    %v1318 = vpop.f32.mrf.mxu0
    %1319 = vmatprep.mubr.f32.mxu0 0.0
    %v1320 = vand.u32 %v338, 4294901760
    %v1321 = vsub.f32 %v338, %v1320
    %1322 = vmatmul.mubr.f32.gmra.mxu0 %v1321
    %v1323 = vpop.f32.mrf.mxu0
    %v1324 = vadd.f32 %v1021, %v1323
    %v1325 = vpop.f32.mrf.mxu0
    %1326 = vmatprep.mubr.f32.mxu0 0.0
    %v1327 = vand.u32 %v341, 4294901760
    %v1328 = vsub.f32 %v341, %v1327
    %1329 = vmatmul.mubr.f32.gmra.mxu0 %v1328
    %v1330 = vpop.f32.mrf.mxu0
    %v1331 = vadd.f32 %v1027, %v1330
    %v1332 = vpop.f32.mrf.mxu0
    %1333 = vmatprep.mubr.f32.mxu0 0.0
    %v1334 = vand.u32 %v344, 4294901760
    %v1335 = vsub.f32 %v344, %v1334
    %1336 = vmatmul.mubr.f32.gmra.mxu0 %v1335
    %v1337 = vpop.f32.mrf.mxu0
    %v1338 = vadd.f32 %v1033, %v1337
    %v1339 = vpop.f32.mrf.mxu0
    %1340 = vdwg.mxu0
    %1341 = vmatprep.subr.mxu0 0.0
    %1342 = vmatpush1.msra.mxu0 0.0
    %1343 = vmatprep.subr.mxu0 0.0
    %1344 = vmatpush1.msra.mxu0 0.0
    %1345 = vmatprep.subr.mxu0 0.0
    %1346 = vmatpush1.msra.mxu0 0.0
    %1347 = vmatprep.subr.mxu0 0.0
    %1348 = vmatpush1.msra.mxu0 0.0
    %1349 = vmatprep.subr.mxu0 0.0
    %1350 = vmatpush1.msra.mxu0 0.0
    %1351 = vmatprep.subr.mxu0 0.0
    %1352 = vmatpush1.msra.mxu0 0.0
    %1353 = vmatprep.subr.mxu0 0.0
    %1354 = vmatpush1.msra.mxu0 0.0
    %1355 = vmatprep.subr.mxu0 0.0
    %1356 = vmatpush1.msra.mxu0 0.0
    %1357 = vmatprep.subr.mxu0 0.0
    %v1358 = vand.u32 %v54, 4294901760
    %1359 = vmatpush1.msra.mxu0 %v1358
    %1360 = vmatprep.subr.mxu0 0.0
    %v1361 = vand.u32 %v53, 4294901760
    %1362 = vmatpush1.msra.mxu0 %v1361
    %1363 = vmatprep.subr.mxu0 0.0
    %v1364 = vand.u32 %v52, 4294901760
    %1365 = vmatpush1.msra.mxu0 %v1364
    %1366 = vmatprep.subr.mxu0 0.0
    %v1367 = vand.u32 %v51, 4294901760
    %1368 = vmatpush1.msra.mxu0 %v1367
    %1369 = vmatprep.subr.mxu0 0.0
    %v1370 = vand.u32 %v50, 4294901760
    %1371 = vmatpush1.msra.mxu0 %v1370
    %1372 = vmatprep.subr.mxu0 0.0
    %v1373 = vand.u32 %v49, 4294901760
    %1374 = vmatpush1.msra.mxu0 %v1373
    %1375 = vmatprep.subr.mxu0 0.0
    %v1376 = vand.u32 %v48, 4294901760
    %1377 = vmatpush1.msra.mxu0 %v1376
    %1378 = vmatprep.subr.mxu0 0.0
    %v1379 = vand.u32 %v47, 4294901760
    %1380 = vmatpush1.msra.mxu0 %v1379
    %1381 = vmatprep.subr.mxu0 0.0
    %1382 = vmatpush2.msra.mxu0 0.0
    %1383 = vmatprep.subr.mxu0 0.0
    %1384 = vmatpush2.msra.mxu0 0.0
    %1385 = vmatprep.subr.mxu0 0.0
    %1386 = vmatpush2.msra.mxu0 0.0
    %1387 = vmatprep.subr.mxu0 0.0
    %1388 = vmatpush2.msra.mxu0 0.0
    %1389 = vmatprep.subr.mxu0 0.0
    %1390 = vmatpush2.msra.mxu0 0.0
    %1391 = vmatprep.subr.mxu0 0.0
    %1392 = vmatpush2.msra.mxu0 0.0
    %1393 = vmatprep.subr.mxu0 0.0
    %1394 = vmatpush2.msra.mxu0 0.0
    %1395 = vmatprep.subr.mxu0 0.0
    %1396 = vmatpush2.msra.mxu0 0.0
    %1397 = vmatprep.subr.mxu0 0.0
    %1398 = vmatpush2.msra.mxu0 0.0
    %1399 = vmatprep.subr.mxu0 0.0
    %1400 = vmatpush2.msra.mxu0 0.0
    %1401 = vmatprep.subr.mxu0 0.0
    %1402 = vmatpush2.msra.mxu0 0.0
    %1403 = vmatprep.subr.mxu0 0.0
    %1404 = vmatpush2.msra.mxu0 0.0
    %1405 = vmatprep.subr.mxu0 0.0
    %1406 = vmatpush2.msra.mxu0 0.0
    %1407 = vmatprep.subr.mxu0 0.0
    %1408 = vmatpush2.msra.mxu0 0.0
    %1409 = vmatprep.subr.mxu0 0.0
    %1410 = vmatpush2.msra.mxu0 0.0
    %1411 = vmatprep.subr.mxu0 0.0
    %1412 = vmatpush2.msra.mxu0 0.0
    %1413 = vmatprep.mubr.f32.mxu0 0.0
    %v1414 = vand.u32 %v251, 4294901760
    %v1415 = vsub.f32 %v251, %v1414
    %v1416 = vand.u32 %v1415, 4294901760
    %1417 = vmatmul.mubr.f32.gmra.mxu0 %v1416
    %v1418 = vpop.f32.mrf.mxu0
    %v1419 = vadd.f32 %v1121, %v1418
    %v1420 = vpop.f32.mrf.mxu0
    %1421 = vmatprep.mubr.f32.mxu0 0.0
    %v1422 = vand.u32 %v254, 4294901760
    %v1423 = vsub.f32 %v254, %v1422
    %v1424 = vand.u32 %v1423, 4294901760
    %1425 = vmatmul.mubr.f32.gmra.mxu0 %v1424
    %v1426 = vpop.f32.mrf.mxu0
    %v1427 = vadd.f32 %v1128, %v1426
    %v1428 = vpop.f32.mrf.mxu0
    %1429 = vmatprep.mubr.f32.mxu0 0.0
    %v1430 = vand.u32 %v257, 4294901760
    %v1431 = vsub.f32 %v257, %v1430
    %v1432 = vand.u32 %v1431, 4294901760
    %1433 = vmatmul.mubr.f32.gmra.mxu0 %v1432
    %v1434 = vpop.f32.mrf.mxu0
    %v1435 = vadd.f32 %v1135, %v1434
    %v1436 = vpop.f32.mrf.mxu0
    %1437 = vmatprep.mubr.f32.mxu0 0.0
    %v1438 = vand.u32 %v260, 4294901760
    %v1439 = vsub.f32 %v260, %v1438
    %v1440 = vand.u32 %v1439, 4294901760
    %1441 = vmatmul.mubr.f32.gmra.mxu0 %v1440
    %v1442 = vpop.f32.mrf.mxu0
    %v1443 = vadd.f32 %v1142, %v1442
    %v1444 = vpop.f32.mrf.mxu0
    %1445 = vmatprep.mubr.f32.mxu0 0.0
    %v1446 = vand.u32 %v263, 4294901760
    %v1447 = vsub.f32 %v263, %v1446
    %v1448 = vand.u32 %v1447, 4294901760
    %1449 = vmatmul.mubr.f32.gmra.mxu0 %v1448
    %v1450 = vpop.f32.mrf.mxu0
    %v1451 = vadd.f32 %v1149, %v1450
    %v1452 = vpop.f32.mrf.mxu0
    %1453 = vmatprep.mubr.f32.mxu0 0.0
    %v1454 = vand.u32 %v266, 4294901760
    %v1455 = vsub.f32 %v266, %v1454
    %v1456 = vand.u32 %v1455, 4294901760
    %1457 = vmatmul.mubr.f32.gmra.mxu0 %v1456
    %v1458 = vpop.f32.mrf.mxu0
    %v1459 = vadd.f32 %v1156, %v1458
    %v1460 = vpop.f32.mrf.mxu0
    %1461 = vmatprep.mubr.f32.mxu0 0.0
    %v1462 = vand.u32 %v269, 4294901760
    %v1463 = vsub.f32 %v269, %v1462
    %v1464 = vand.u32 %v1463, 4294901760
    %1465 = vmatmul.mubr.f32.gmra.mxu0 %v1464
    %v1466 = vpop.f32.mrf.mxu0
    %v1467 = vadd.f32 %v1163, %v1466
    %v1468 = vpop.f32.mrf.mxu0
    %1469 = vmatprep.mubr.f32.mxu0 0.0
    %v1470 = vand.u32 %v272, 4294901760
    %v1471 = vsub.f32 %v272, %v1470
    %v1472 = vand.u32 %v1471, 4294901760
    %1473 = vmatmul.mubr.f32.gmra.mxu0 %v1472
    %v1474 = vpop.f32.mrf.mxu0
    %v1475 = vadd.f32 %v1170, %v1474
    %v1476 = vpop.f32.mrf.mxu0
    %1477 = vmatprep.mubr.f32.mxu0 0.0
    %v1478 = vand.u32 %v275, 4294901760
    %v1479 = vsub.f32 %v275, %v1478
    %v1480 = vand.u32 %v1479, 4294901760
    %1481 = vmatmul.mubr.f32.gmra.mxu0 %v1480
    %v1482 = vpop.f32.mrf.mxu0
    %v1483 = vadd.f32 %v1177, %v1482
    %v1484 = vpop.f32.mrf.mxu0
    %1485 = vmatprep.mubr.f32.mxu0 0.0
    %v1486 = vand.u32 %v278, 4294901760
    %v1487 = vsub.f32 %v278, %v1486
    %v1488 = vand.u32 %v1487, 4294901760
    %1489 = vmatmul.mubr.f32.gmra.mxu0 %v1488
    %v1490 = vpop.f32.mrf.mxu0
    %v1491 = vadd.f32 %v1184, %v1490
    %v1492 = vpop.f32.mrf.mxu0
    %1493 = vmatprep.mubr.f32.mxu0 0.0
    %v1494 = vand.u32 %v281, 4294901760
    %v1495 = vsub.f32 %v281, %v1494
    %v1496 = vand.u32 %v1495, 4294901760
    %1497 = vmatmul.mubr.f32.gmra.mxu0 %v1496
    %v1498 = vpop.f32.mrf.mxu0
    %v1499 = vadd.f32 %v1191, %v1498
    %v1500 = vpop.f32.mrf.mxu0
    %1501 = vmatprep.mubr.f32.mxu0 0.0
    %v1502 = vand.u32 %v284, 4294901760
    %v1503 = vsub.f32 %v284, %v1502
    %v1504 = vand.u32 %v1503, 4294901760
    %1505 = vmatmul.mubr.f32.gmra.mxu0 %v1504
    %v1506 = vpop.f32.mrf.mxu0
    %v1507 = vadd.f32 %v1198, %v1506
    %v1508 = vpop.f32.mrf.mxu0
    %1509 = vmatprep.mubr.f32.mxu0 0.0
    %v1510 = vand.u32 %v287, 4294901760
    %v1511 = vsub.f32 %v287, %v1510
    %v1512 = vand.u32 %v1511, 4294901760
    %1513 = vmatmul.mubr.f32.gmra.mxu0 %v1512
    %v1514 = vpop.f32.mrf.mxu0
    %v1515 = vadd.f32 %v1205, %v1514
    %v1516 = vpop.f32.mrf.mxu0
    %1517 = vmatprep.mubr.f32.mxu0 0.0
    %v1518 = vand.u32 %v290, 4294901760
    %v1519 = vsub.f32 %v290, %v1518
    %v1520 = vand.u32 %v1519, 4294901760
    %1521 = vmatmul.mubr.f32.gmra.mxu0 %v1520
    %v1522 = vpop.f32.mrf.mxu0
    %v1523 = vadd.f32 %v1212, %v1522
    %v1524 = vpop.f32.mrf.mxu0
    %1525 = vmatprep.mubr.f32.mxu0 0.0
    %v1526 = vand.u32 %v293, 4294901760
    %v1527 = vsub.f32 %v293, %v1526
    %v1528 = vand.u32 %v1527, 4294901760
    %1529 = vmatmul.mubr.f32.gmra.mxu0 %v1528
    %v1530 = vpop.f32.mrf.mxu0
    %v1531 = vadd.f32 %v1219, %v1530
    %v1532 = vpop.f32.mrf.mxu0
    %1533 = vmatprep.mubr.f32.mxu0 0.0
    %v1534 = vand.u32 %v296, 4294901760
    %v1535 = vsub.f32 %v296, %v1534
    %v1536 = vand.u32 %v1535, 4294901760
    %1537 = vmatmul.mubr.f32.gmra.mxu0 %v1536
    %v1538 = vpop.f32.mrf.mxu0
    %v1539 = vadd.f32 %v1226, %v1538
    %v1540 = vpop.f32.mrf.mxu0
    %1541 = vmatprep.mubr.f32.mxu0 0.0
    %v1542 = vand.u32 %v299, 4294901760
    %v1543 = vsub.f32 %v299, %v1542
    %v1544 = vand.u32 %v1543, 4294901760
    %1545 = vmatmul.mubr.f32.gmra.mxu0 %v1544
    %v1546 = vpop.f32.mrf.mxu0
    %v1547 = vadd.f32 %v1233, %v1546
    %v1548 = vpop.f32.mrf.mxu0
    %1549 = vmatprep.mubr.f32.mxu0 0.0
    %v1550 = vand.u32 %v302, 4294901760
    %v1551 = vsub.f32 %v302, %v1550
    %v1552 = vand.u32 %v1551, 4294901760
    %1553 = vmatmul.mubr.f32.gmra.mxu0 %v1552
    %v1554 = vpop.f32.mrf.mxu0
    %v1555 = vadd.f32 %v1240, %v1554
    %v1556 = vpop.f32.mrf.mxu0
    %1557 = vmatprep.mubr.f32.mxu0 0.0
    %v1558 = vand.u32 %v305, 4294901760
    %v1559 = vsub.f32 %v305, %v1558
    %v1560 = vand.u32 %v1559, 4294901760
    %1561 = vmatmul.mubr.f32.gmra.mxu0 %v1560
    %v1562 = vpop.f32.mrf.mxu0
    %v1563 = vadd.f32 %v1247, %v1562
    %v1564 = vpop.f32.mrf.mxu0
    %1565 = vmatprep.mubr.f32.mxu0 0.0
    %v1566 = vand.u32 %v308, 4294901760
    %v1567 = vsub.f32 %v308, %v1566
    %v1568 = vand.u32 %v1567, 4294901760
    %1569 = vmatmul.mubr.f32.gmra.mxu0 %v1568
    %v1570 = vpop.f32.mrf.mxu0
    %v1571 = vadd.f32 %v1254, %v1570
    %v1572 = vpop.f32.mrf.mxu0
    %1573 = vmatprep.mubr.f32.mxu0 0.0
    %v1574 = vand.u32 %v311, 4294901760
    %v1575 = vsub.f32 %v311, %v1574
    %v1576 = vand.u32 %v1575, 4294901760
    %1577 = vmatmul.mubr.f32.gmra.mxu0 %v1576
    %v1578 = vpop.f32.mrf.mxu0
    %v1579 = vadd.f32 %v1261, %v1578
    %v1580 = vpop.f32.mrf.mxu0
    %1581 = vmatprep.mubr.f32.mxu0 0.0
    %v1582 = vand.u32 %v314, 4294901760
    %v1583 = vsub.f32 %v314, %v1582
    %v1584 = vand.u32 %v1583, 4294901760
    %1585 = vmatmul.mubr.f32.gmra.mxu0 %v1584
    %v1586 = vpop.f32.mrf.mxu0
    %v1587 = vadd.f32 %v1268, %v1586
    %v1588 = vpop.f32.mrf.mxu0
    %1589 = vmatprep.mubr.f32.mxu0 0.0
    %v1590 = vand.u32 %v317, 4294901760
    %v1591 = vsub.f32 %v317, %v1590
    %v1592 = vand.u32 %v1591, 4294901760
    %1593 = vmatmul.mubr.f32.gmra.mxu0 %v1592
    %v1594 = vpop.f32.mrf.mxu0
    %v1595 = vadd.f32 %v1275, %v1594
    %v1596 = vpop.f32.mrf.mxu0
    %1597 = vmatprep.mubr.f32.mxu0 0.0
    %v1598 = vand.u32 %v320, 4294901760
    %v1599 = vsub.f32 %v320, %v1598
    %v1600 = vand.u32 %v1599, 4294901760
    %1601 = vmatmul.mubr.f32.gmra.mxu0 %v1600
    %v1602 = vpop.f32.mrf.mxu0
    %v1603 = vadd.f32 %v1282, %v1602
    %v1604 = vpop.f32.mrf.mxu0
    %1605 = vmatprep.mubr.f32.mxu0 0.0
    %v1606 = vand.u32 %v323, 4294901760
    %v1607 = vsub.f32 %v323, %v1606
    %v1608 = vand.u32 %v1607, 4294901760
    %1609 = vmatmul.mubr.f32.gmra.mxu0 %v1608
    %v1610 = vpop.f32.mrf.mxu0
    %v1611 = vadd.f32 %v1289, %v1610
    %v1612 = vpop.f32.mrf.mxu0
    %1613 = vmatprep.mubr.f32.mxu0 0.0
    %v1614 = vand.u32 %v326, 4294901760
    %v1615 = vsub.f32 %v326, %v1614
    %v1616 = vand.u32 %v1615, 4294901760
    %1617 = vmatmul.mubr.f32.gmra.mxu0 %v1616
    %v1618 = vpop.f32.mrf.mxu0
    %v1619 = vadd.f32 %v1296, %v1618
    %v1620 = vpop.f32.mrf.mxu0
    %1621 = vmatprep.mubr.f32.mxu0 0.0
    %v1622 = vand.u32 %v329, 4294901760
    %v1623 = vsub.f32 %v329, %v1622
    %v1624 = vand.u32 %v1623, 4294901760
    %1625 = vmatmul.mubr.f32.gmra.mxu0 %v1624
    %v1626 = vpop.f32.mrf.mxu0
    %v1627 = vadd.f32 %v1303, %v1626
    %v1628 = vpop.f32.mrf.mxu0
    %1629 = vmatprep.mubr.f32.mxu0 0.0
    %v1630 = vand.u32 %v332, 4294901760
    %v1631 = vsub.f32 %v332, %v1630
    %v1632 = vand.u32 %v1631, 4294901760
    %1633 = vmatmul.mubr.f32.gmra.mxu0 %v1632
    %v1634 = vpop.f32.mrf.mxu0
    %v1635 = vadd.f32 %v1310, %v1634
    %v1636 = vpop.f32.mrf.mxu0
    %1637 = vmatprep.mubr.f32.mxu0 0.0
    %v1638 = vand.u32 %v335, 4294901760
    %v1639 = vsub.f32 %v335, %v1638
    %v1640 = vand.u32 %v1639, 4294901760
    %1641 = vmatmul.mubr.f32.gmra.mxu0 %v1640
    %v1642 = vpop.f32.mrf.mxu0
    %v1643 = vadd.f32 %v1317, %v1642
    %v1644 = vpop.f32.mrf.mxu0
    %1645 = vmatprep.mubr.f32.mxu0 0.0
    %v1646 = vand.u32 %v338, 4294901760
    %v1647 = vsub.f32 %v338, %v1646
    %v1648 = vand.u32 %v1647, 4294901760
    %1649 = vmatmul.mubr.f32.gmra.mxu0 %v1648
    %v1650 = vpop.f32.mrf.mxu0
    %v1651 = vadd.f32 %v1324, %v1650
    %v1652 = vpop.f32.mrf.mxu0
    %1653 = vmatprep.mubr.f32.mxu0 0.0
    %v1654 = vand.u32 %v341, 4294901760
    %v1655 = vsub.f32 %v341, %v1654
    %v1656 = vand.u32 %v1655, 4294901760
    %1657 = vmatmul.mubr.f32.gmra.mxu0 %v1656
    %v1658 = vpop.f32.mrf.mxu0
    %v1659 = vadd.f32 %v1331, %v1658
    %v1660 = vpop.f32.mrf.mxu0
    %1661 = vmatprep.mubr.f32.mxu0 0.0
    %v1662 = vand.u32 %v344, 4294901760
    %v1663 = vsub.f32 %v344, %v1662
    %v1664 = vand.u32 %v1663, 4294901760
    %1665 = vmatmul.mubr.f32.gmra.mxu0 %v1664
    %v1666 = vpop.f32.mrf.mxu0
    %v1667 = vadd.f32 %v1338, %v1666
    %v1668 = vpop.f32.mrf.mxu0
    %1669 = vdwg.mxu0
    %1670 = vmatprep.subr.mxu0 0.0
    %1671 = vmatpush1.msra.mxu0 0.0
    %1672 = vmatprep.subr.mxu0 0.0
    %1673 = vmatpush1.msra.mxu0 0.0
    %1674 = vmatprep.subr.mxu0 0.0
    %1675 = vmatpush1.msra.mxu0 0.0
    %1676 = vmatprep.subr.mxu0 0.0
    %1677 = vmatpush1.msra.mxu0 0.0
    %1678 = vmatprep.subr.mxu0 0.0
    %1679 = vmatpush1.msra.mxu0 0.0
    %1680 = vmatprep.subr.mxu0 0.0
    %1681 = vmatpush1.msra.mxu0 0.0
    %1682 = vmatprep.subr.mxu0 0.0
    %1683 = vmatpush1.msra.mxu0 0.0
    %1684 = vmatprep.subr.mxu0 0.0
    %1685 = vmatpush1.msra.mxu0 0.0
    %1686 = vmatprep.subr.mxu0 0.0
    %v1687 = vand.u32 %v54, 4294901760
    %v1688 = vsub.f32 %v54, %v1687
    %v1689 = vand.u32 %v1688, 4294901760
    %1690 = vmatpush1.msra.mxu0 %v1689
    %1691 = vmatprep.subr.mxu0 0.0
    %v1692 = vand.u32 %v53, 4294901760
    %v1693 = vsub.f32 %v53, %v1692
    %v1694 = vand.u32 %v1693, 4294901760
    %1695 = vmatpush1.msra.mxu0 %v1694
    %1696 = vmatprep.subr.mxu0 0.0
    %v1697 = vand.u32 %v52, 4294901760
    %v1698 = vsub.f32 %v52, %v1697
    %v1699 = vand.u32 %v1698, 4294901760
    %1700 = vmatpush1.msra.mxu0 %v1699
    %1701 = vmatprep.subr.mxu0 0.0
    %v1702 = vand.u32 %v51, 4294901760
    %v1703 = vsub.f32 %v51, %v1702
    %v1704 = vand.u32 %v1703, 4294901760
    %1705 = vmatpush1.msra.mxu0 %v1704
    %1706 = vmatprep.subr.mxu0 0.0
    %v1707 = vand.u32 %v50, 4294901760
    %v1708 = vsub.f32 %v50, %v1707
    %v1709 = vand.u32 %v1708, 4294901760
    %1710 = vmatpush1.msra.mxu0 %v1709
    %1711 = vmatprep.subr.mxu0 0.0
    %v1712 = vand.u32 %v49, 4294901760
    %v1713 = vsub.f32 %v49, %v1712
    %v1714 = vand.u32 %v1713, 4294901760
    %1715 = vmatpush1.msra.mxu0 %v1714
    %1716 = vmatprep.subr.mxu0 0.0
    %v1717 = vand.u32 %v48, 4294901760
    %v1718 = vsub.f32 %v48, %v1717
    %v1719 = vand.u32 %v1718, 4294901760
    %1720 = vmatpush1.msra.mxu0 %v1719
    %1721 = vmatprep.subr.mxu0 0.0
    %v1722 = vand.u32 %v47, 4294901760
    %v1723 = vsub.f32 %v47, %v1722
    %v1724 = vand.u32 %v1723, 4294901760
    %1725 = vmatpush1.msra.mxu0 %v1724
    %1726 = vmatprep.subr.mxu0 0.0
    %1727 = vmatpush2.msra.mxu0 0.0
    %1728 = vmatprep.subr.mxu0 0.0
    %1729 = vmatpush2.msra.mxu0 0.0
    %1730 = vmatprep.subr.mxu0 0.0
    %1731 = vmatpush2.msra.mxu0 0.0
    %1732 = vmatprep.subr.mxu0 0.0
    %1733 = vmatpush2.msra.mxu0 0.0
    %1734 = vmatprep.subr.mxu0 0.0
    %1735 = vmatpush2.msra.mxu0 0.0
    %1736 = vmatprep.subr.mxu0 0.0
    %1737 = vmatpush2.msra.mxu0 0.0
    %1738 = vmatprep.subr.mxu0 0.0
    %1739 = vmatpush2.msra.mxu0 0.0
    %1740 = vmatprep.subr.mxu0 0.0
    %1741 = vmatpush2.msra.mxu0 0.0
    %1742 = vmatprep.subr.mxu0 0.0
    %1743 = vmatpush2.msra.mxu0 0.0
    %1744 = vmatprep.subr.mxu0 0.0
    %1745 = vmatpush2.msra.mxu0 0.0
    %1746 = vmatprep.subr.mxu0 0.0
    %1747 = vmatpush2.msra.mxu0 0.0
    %1748 = vmatprep.subr.mxu0 0.0
    %1749 = vmatpush2.msra.mxu0 0.0
    %1750 = vmatprep.subr.mxu0 0.0
    %1751 = vmatpush2.msra.mxu0 0.0
    %1752 = vmatprep.subr.mxu0 0.0
    %1753 = vmatpush2.msra.mxu0 0.0
    %1754 = vmatprep.subr.mxu0 0.0
    %1755 = vmatpush2.msra.mxu0 0.0
    %1756 = vmatprep.subr.mxu0 0.0
    %1757 = vmatpush2.msra.mxu0 0.0
    %1758 = vmatprep.mubr.f32.mxu0 0.0
    %v1759 = vand.u32 %v251, 4294901760
    %1760 = vmatmul.mubr.f32.gmra.mxu0 %v1759
    %v1761 = vpop.f32.mrf.mxu0
    %v1762 = vadd.f32 %v1419, %v1761
    %v1763 = vpop.f32.mrf.mxu0
    %1764 = vmatprep.mubr.f32.mxu0 0.0
    %v1765 = vand.u32 %v254, 4294901760
    %1766 = vmatmul.mubr.f32.gmra.mxu0 %v1765
    %v1767 = vpop.f32.mrf.mxu0
    %v1768 = vadd.f32 %v1427, %v1767
    %v1769 = vpop.f32.mrf.mxu0
    %1770 = vmatprep.mubr.f32.mxu0 0.0
    %v1771 = vand.u32 %v257, 4294901760
    %1772 = vmatmul.mubr.f32.gmra.mxu0 %v1771
    %v1773 = vpop.f32.mrf.mxu0
    %v1774 = vadd.f32 %v1435, %v1773
    %v1775 = vpop.f32.mrf.mxu0
    %1776 = vmatprep.mubr.f32.mxu0 0.0
    %v1777 = vand.u32 %v260, 4294901760
    %1778 = vmatmul.mubr.f32.gmra.mxu0 %v1777
    %v1779 = vpop.f32.mrf.mxu0
    %v1780 = vadd.f32 %v1443, %v1779
    %v1781 = vpop.f32.mrf.mxu0
    %1782 = vmatprep.mubr.f32.mxu0 0.0
    %v1783 = vand.u32 %v263, 4294901760
    %1784 = vmatmul.mubr.f32.gmra.mxu0 %v1783
    %v1785 = vpop.f32.mrf.mxu0
    %v1786 = vadd.f32 %v1451, %v1785
    %v1787 = vpop.f32.mrf.mxu0
    %1788 = vmatprep.mubr.f32.mxu0 0.0
    %v1789 = vand.u32 %v266, 4294901760
    %1790 = vmatmul.mubr.f32.gmra.mxu0 %v1789
    %v1791 = vpop.f32.mrf.mxu0
    %v1792 = vadd.f32 %v1459, %v1791
    %v1793 = vpop.f32.mrf.mxu0
    %1794 = vmatprep.mubr.f32.mxu0 0.0
    %v1795 = vand.u32 %v269, 4294901760
    %1796 = vmatmul.mubr.f32.gmra.mxu0 %v1795
    %v1797 = vpop.f32.mrf.mxu0
    %v1798 = vadd.f32 %v1467, %v1797
    %v1799 = vpop.f32.mrf.mxu0
    %1800 = vmatprep.mubr.f32.mxu0 0.0
    %v1801 = vand.u32 %v272, 4294901760
    %1802 = vmatmul.mubr.f32.gmra.mxu0 %v1801
    %v1803 = vpop.f32.mrf.mxu0
    %v1804 = vadd.f32 %v1475, %v1803
    %v1805 = vpop.f32.mrf.mxu0
    %1806 = vmatprep.mubr.f32.mxu0 0.0
    %v1807 = vand.u32 %v275, 4294901760
    %1808 = vmatmul.mubr.f32.gmra.mxu0 %v1807
    %v1809 = vpop.f32.mrf.mxu0
    %v1810 = vadd.f32 %v1483, %v1809
    %v1811 = vpop.f32.mrf.mxu0
    %1812 = vmatprep.mubr.f32.mxu0 0.0
    %v1813 = vand.u32 %v278, 4294901760
    %1814 = vmatmul.mubr.f32.gmra.mxu0 %v1813
    %v1815 = vpop.f32.mrf.mxu0
    %v1816 = vadd.f32 %v1491, %v1815
    %v1817 = vpop.f32.mrf.mxu0
    %1818 = vmatprep.mubr.f32.mxu0 0.0
    %v1819 = vand.u32 %v281, 4294901760
    %1820 = vmatmul.mubr.f32.gmra.mxu0 %v1819
    %v1821 = vpop.f32.mrf.mxu0
    %v1822 = vadd.f32 %v1499, %v1821
    %v1823 = vpop.f32.mrf.mxu0
    %1824 = vmatprep.mubr.f32.mxu0 0.0
    %v1825 = vand.u32 %v284, 4294901760
    %1826 = vmatmul.mubr.f32.gmra.mxu0 %v1825
    %v1827 = vpop.f32.mrf.mxu0
    %v1828 = vadd.f32 %v1507, %v1827
    %v1829 = vpop.f32.mrf.mxu0
    %1830 = vmatprep.mubr.f32.mxu0 0.0
    %v1831 = vand.u32 %v287, 4294901760
    %1832 = vmatmul.mubr.f32.gmra.mxu0 %v1831
    %v1833 = vpop.f32.mrf.mxu0
    %v1834 = vadd.f32 %v1515, %v1833
    %v1835 = vpop.f32.mrf.mxu0
    %1836 = vmatprep.mubr.f32.mxu0 0.0
    %v1837 = vand.u32 %v290, 4294901760
    %1838 = vmatmul.mubr.f32.gmra.mxu0 %v1837
    %v1839 = vpop.f32.mrf.mxu0
    %v1840 = vadd.f32 %v1523, %v1839
    %v1841 = vpop.f32.mrf.mxu0
    %1842 = vmatprep.mubr.f32.mxu0 0.0
    %v1843 = vand.u32 %v293, 4294901760
    %1844 = vmatmul.mubr.f32.gmra.mxu0 %v1843
    %v1845 = vpop.f32.mrf.mxu0
    %v1846 = vadd.f32 %v1531, %v1845
    %v1847 = vpop.f32.mrf.mxu0
    %1848 = vmatprep.mubr.f32.mxu0 0.0
    %v1849 = vand.u32 %v296, 4294901760
    %1850 = vmatmul.mubr.f32.gmra.mxu0 %v1849
    %v1851 = vpop.f32.mrf.mxu0
    %v1852 = vadd.f32 %v1539, %v1851
    %v1853 = vpop.f32.mrf.mxu0
    %1854 = vmatprep.mubr.f32.mxu0 0.0
    %v1855 = vand.u32 %v299, 4294901760
    %1856 = vmatmul.mubr.f32.gmra.mxu0 %v1855
    %v1857 = vpop.f32.mrf.mxu0
    %v1858 = vadd.f32 %v1547, %v1857
    %v1859 = vpop.f32.mrf.mxu0
    %1860 = vmatprep.mubr.f32.mxu0 0.0
    %v1861 = vand.u32 %v302, 4294901760
    %1862 = vmatmul.mubr.f32.gmra.mxu0 %v1861
    %v1863 = vpop.f32.mrf.mxu0
    %v1864 = vadd.f32 %v1555, %v1863
    %v1865 = vpop.f32.mrf.mxu0
    %1866 = vmatprep.mubr.f32.mxu0 0.0
    %v1867 = vand.u32 %v305, 4294901760
    %1868 = vmatmul.mubr.f32.gmra.mxu0 %v1867
    %v1869 = vpop.f32.mrf.mxu0
    %v1870 = vadd.f32 %v1563, %v1869
    %v1871 = vpop.f32.mrf.mxu0
    %1872 = vmatprep.mubr.f32.mxu0 0.0
    %v1873 = vand.u32 %v308, 4294901760
    %1874 = vmatmul.mubr.f32.gmra.mxu0 %v1873
    %v1875 = vpop.f32.mrf.mxu0
    %v1876 = vadd.f32 %v1571, %v1875
    %v1877 = vpop.f32.mrf.mxu0
    %1878 = vmatprep.mubr.f32.mxu0 0.0
    %v1879 = vand.u32 %v311, 4294901760
    %1880 = vmatmul.mubr.f32.gmra.mxu0 %v1879
    %v1881 = vpop.f32.mrf.mxu0
    %v1882 = vadd.f32 %v1579, %v1881
    %v1883 = vpop.f32.mrf.mxu0
    %1884 = vmatprep.mubr.f32.mxu0 0.0
    %v1885 = vand.u32 %v314, 4294901760
    %1886 = vmatmul.mubr.f32.gmra.mxu0 %v1885
    %v1887 = vpop.f32.mrf.mxu0
    %v1888 = vadd.f32 %v1587, %v1887
    %v1889 = vpop.f32.mrf.mxu0
    %1890 = vmatprep.mubr.f32.mxu0 0.0
    %v1891 = vand.u32 %v317, 4294901760
    %1892 = vmatmul.mubr.f32.gmra.mxu0 %v1891
    %v1893 = vpop.f32.mrf.mxu0
    %v1894 = vadd.f32 %v1595, %v1893
    %v1895 = vpop.f32.mrf.mxu0
    %1896 = vmatprep.mubr.f32.mxu0 0.0
    %v1897 = vand.u32 %v320, 4294901760
    %1898 = vmatmul.mubr.f32.gmra.mxu0 %v1897
    %v1899 = vpop.f32.mrf.mxu0
    %v1900 = vadd.f32 %v1603, %v1899
    %v1901 = vpop.f32.mrf.mxu0
    %1902 = vmatprep.mubr.f32.mxu0 0.0
    %v1903 = vand.u32 %v323, 4294901760
    %1904 = vmatmul.mubr.f32.gmra.mxu0 %v1903
    %v1905 = vpop.f32.mrf.mxu0
    %v1906 = vadd.f32 %v1611, %v1905
    %v1907 = vpop.f32.mrf.mxu0
    %1908 = vmatprep.mubr.f32.mxu0 0.0
    %v1909 = vand.u32 %v326, 4294901760
    %1910 = vmatmul.mubr.f32.gmra.mxu0 %v1909
    %v1911 = vpop.f32.mrf.mxu0
    %v1912 = vadd.f32 %v1619, %v1911
    %v1913 = vpop.f32.mrf.mxu0
    %1914 = vmatprep.mubr.f32.mxu0 0.0
    %v1915 = vand.u32 %v329, 4294901760
    %1916 = vmatmul.mubr.f32.gmra.mxu0 %v1915
    %v1917 = vpop.f32.mrf.mxu0
    %v1918 = vadd.f32 %v1627, %v1917
    %v1919 = vpop.f32.mrf.mxu0
    %1920 = vmatprep.mubr.f32.mxu0 0.0
    %v1921 = vand.u32 %v332, 4294901760
    %1922 = vmatmul.mubr.f32.gmra.mxu0 %v1921
    %v1923 = vpop.f32.mrf.mxu0
    %v1924 = vadd.f32 %v1635, %v1923
    %v1925 = vpop.f32.mrf.mxu0
    %1926 = vmatprep.mubr.f32.mxu0 0.0
    %v1927 = vand.u32 %v335, 4294901760
    %1928 = vmatmul.mubr.f32.gmra.mxu0 %v1927
    %v1929 = vpop.f32.mrf.mxu0
    %v1930 = vadd.f32 %v1643, %v1929
    %v1931 = vpop.f32.mrf.mxu0
    %1932 = vmatprep.mubr.f32.mxu0 0.0
    %v1933 = vand.u32 %v338, 4294901760
    %1934 = vmatmul.mubr.f32.gmra.mxu0 %v1933
    %v1935 = vpop.f32.mrf.mxu0
    %v1936 = vadd.f32 %v1651, %v1935
    %v1937 = vpop.f32.mrf.mxu0
    %1938 = vmatprep.mubr.f32.mxu0 0.0
    %v1939 = vand.u32 %v341, 4294901760
    %1940 = vmatmul.mubr.f32.gmra.mxu0 %v1939
    %v1941 = vpop.f32.mrf.mxu0
    %v1942 = vadd.f32 %v1659, %v1941
    %v1943 = vpop.f32.mrf.mxu0
    %1944 = vmatprep.mubr.f32.mxu0 0.0
    %v1945 = vand.u32 %v344, 4294901760
    %1946 = vmatmul.mubr.f32.gmra.mxu0 %v1945
    %v1947 = vpop.f32.mrf.mxu0
    %v1948 = vadd.f32 %v1667, %v1947
    %v1949 = vpop.f32.mrf.mxu0
    %1950 = vdwg.mxu0
    %1951 = vmatprep.subr.mxu0 0.0
    %1952 = vmatpush1.msra.mxu0 0.0
    %1953 = vmatprep.subr.mxu0 0.0
    %1954 = vmatpush1.msra.mxu0 0.0
    %1955 = vmatprep.subr.mxu0 0.0
    %1956 = vmatpush1.msra.mxu0 0.0
    %1957 = vmatprep.subr.mxu0 0.0
    %1958 = vmatpush1.msra.mxu0 0.0
    %1959 = vmatprep.subr.mxu0 0.0
    %1960 = vmatpush1.msra.mxu0 0.0
    %1961 = vmatprep.subr.mxu0 0.0
    %1962 = vmatpush1.msra.mxu0 0.0
    %1963 = vmatprep.subr.mxu0 0.0
    %1964 = vmatpush1.msra.mxu0 0.0
    %1965 = vmatprep.subr.mxu0 0.0
    %1966 = vmatpush1.msra.mxu0 0.0
    %1967 = vmatprep.subr.mxu0 0.0
    %v1968 = vand.u32 %v54, 4294901760
    %1969 = vmatpush1.msra.mxu0 %v1968
    %1970 = vmatprep.subr.mxu0 0.0
    %v1971 = vand.u32 %v53, 4294901760
    %1972 = vmatpush1.msra.mxu0 %v1971
    %1973 = vmatprep.subr.mxu0 0.0
    %v1974 = vand.u32 %v52, 4294901760
    %1975 = vmatpush1.msra.mxu0 %v1974
    %1976 = vmatprep.subr.mxu0 0.0
    %v1977 = vand.u32 %v51, 4294901760
    %1978 = vmatpush1.msra.mxu0 %v1977
    %1979 = vmatprep.subr.mxu0 0.0
    %v1980 = vand.u32 %v50, 4294901760
    %1981 = vmatpush1.msra.mxu0 %v1980
    %1982 = vmatprep.subr.mxu0 0.0
    %v1983 = vand.u32 %v49, 4294901760
    %1984 = vmatpush1.msra.mxu0 %v1983
    %1985 = vmatprep.subr.mxu0 0.0
    %v1986 = vand.u32 %v48, 4294901760
    %1987 = vmatpush1.msra.mxu0 %v1986
    %1988 = vmatprep.subr.mxu0 0.0
    %v1989 = vand.u32 %v47, 4294901760
    %1990 = vmatpush1.msra.mxu0 %v1989
    %1991 = vmatprep.subr.mxu0 0.0
    %1992 = vmatpush2.msra.mxu0 0.0
    %1993 = vmatprep.subr.mxu0 0.0
    %1994 = vmatpush2.msra.mxu0 0.0
    %1995 = vmatprep.subr.mxu0 0.0
    %1996 = vmatpush2.msra.mxu0 0.0
    %1997 = vmatprep.subr.mxu0 0.0
    %1998 = vmatpush2.msra.mxu0 0.0
    %1999 = vmatprep.subr.mxu0 0.0
    %2000 = vmatpush2.msra.mxu0 0.0
    %2001 = vmatprep.subr.mxu0 0.0
    %2002 = vmatpush2.msra.mxu0 0.0
    %2003 = vmatprep.subr.mxu0 0.0
    %2004 = vmatpush2.msra.mxu0 0.0
    %2005 = vmatprep.subr.mxu0 0.0
    %2006 = vmatpush2.msra.mxu0 0.0
    %2007 = vmatprep.subr.mxu0 0.0
    %2008 = vmatpush2.msra.mxu0 0.0
    %2009 = vmatprep.subr.mxu0 0.0
    %2010 = vmatpush2.msra.mxu0 0.0
    %2011 = vmatprep.subr.mxu0 0.0
    %2012 = vmatpush2.msra.mxu0 0.0
    %2013 = vmatprep.subr.mxu0 0.0
    %2014 = vmatpush2.msra.mxu0 0.0
    %2015 = vmatprep.subr.mxu0 0.0
    %2016 = vmatpush2.msra.mxu0 0.0
    %2017 = vmatprep.subr.mxu0 0.0
    %2018 = vmatpush2.msra.mxu0 0.0
    %2019 = vmatprep.subr.mxu0 0.0
    %2020 = vmatpush2.msra.mxu0 0.0
    %2021 = vmatprep.subr.mxu0 0.0
    %2022 = vmatpush2.msra.mxu0 0.0
    %2023 = vmatprep.mubr.f32.mxu0 0.0
    %v2024 = vand.u32 %v251, 4294901760
    %2025 = vmatmul.mubr.f32.gmra.mxu0 %v2024
    %v2026 = vpop.f32.mrf.mxu0
    %v2027 = vadd.f32 %v1762, %v2026
    %v2028 = vpop.f32.mrf.mxu0
    %2029 = vmatprep.mubr.f32.mxu0 0.0
    %v2030 = vand.u32 %v254, 4294901760
    %2031 = vmatmul.mubr.f32.gmra.mxu0 %v2030
    %v2032 = vpop.f32.mrf.mxu0
    %v2033 = vadd.f32 %v1768, %v2032
    %v2034 = vpop.f32.mrf.mxu0
    %2035 = vmatprep.mubr.f32.mxu0 0.0
    %v2036 = vand.u32 %v257, 4294901760
    %2037 = vmatmul.mubr.f32.gmra.mxu0 %v2036
    %v2038 = vpop.f32.mrf.mxu0
    %v2039 = vadd.f32 %v1774, %v2038
    %v2040 = vpop.f32.mrf.mxu0
    %2041 = vmatprep.mubr.f32.mxu0 0.0
    %v2042 = vand.u32 %v260, 4294901760
    %2043 = vmatmul.mubr.f32.gmra.mxu0 %v2042
    %v2044 = vpop.f32.mrf.mxu0
    %v2045 = vadd.f32 %v1780, %v2044
    %v2046 = vpop.f32.mrf.mxu0
    %2047 = vmatprep.mubr.f32.mxu0 0.0
    %v2048 = vand.u32 %v263, 4294901760
    %2049 = vmatmul.mubr.f32.gmra.mxu0 %v2048
    %v2050 = vpop.f32.mrf.mxu0
    %v2051 = vadd.f32 %v1786, %v2050
    %v2052 = vpop.f32.mrf.mxu0
    %2053 = vmatprep.mubr.f32.mxu0 0.0
    %v2054 = vand.u32 %v266, 4294901760
    %2055 = vmatmul.mubr.f32.gmra.mxu0 %v2054
    %v2056 = vpop.f32.mrf.mxu0
    %v2057 = vadd.f32 %v1792, %v2056
    %v2058 = vpop.f32.mrf.mxu0
    %2059 = vmatprep.mubr.f32.mxu0 0.0
    %v2060 = vand.u32 %v269, 4294901760
    %2061 = vmatmul.mubr.f32.gmra.mxu0 %v2060
    %v2062 = vpop.f32.mrf.mxu0
    %v2063 = vadd.f32 %v1798, %v2062
    %v2064 = vpop.f32.mrf.mxu0
    %2065 = vmatprep.mubr.f32.mxu0 0.0
    %v2066 = vand.u32 %v272, 4294901760
    %2067 = vmatmul.mubr.f32.gmra.mxu0 %v2066
    %v2068 = vpop.f32.mrf.mxu0
    %v2069 = vadd.f32 %v1804, %v2068
    %v2070 = vpop.f32.mrf.mxu0
    %2071 = vmatprep.mubr.f32.mxu0 0.0
    %v2072 = vand.u32 %v275, 4294901760
    %2073 = vmatmul.mubr.f32.gmra.mxu0 %v2072
    %v2074 = vpop.f32.mrf.mxu0
    %v2075 = vadd.f32 %v1810, %v2074
    %v2076 = vpop.f32.mrf.mxu0
    %2077 = vmatprep.mubr.f32.mxu0 0.0
    %v2078 = vand.u32 %v278, 4294901760
    %2079 = vmatmul.mubr.f32.gmra.mxu0 %v2078
    %v2080 = vpop.f32.mrf.mxu0
    %v2081 = vadd.f32 %v1816, %v2080
    %v2082 = vpop.f32.mrf.mxu0
    %2083 = vmatprep.mubr.f32.mxu0 0.0
    %v2084 = vand.u32 %v281, 4294901760
    %2085 = vmatmul.mubr.f32.gmra.mxu0 %v2084
    %v2086 = vpop.f32.mrf.mxu0
    %v2087 = vadd.f32 %v1822, %v2086
    %v2088 = vpop.f32.mrf.mxu0
    %2089 = vmatprep.mubr.f32.mxu0 0.0
    %v2090 = vand.u32 %v284, 4294901760
    %2091 = vmatmul.mubr.f32.gmra.mxu0 %v2090
    %v2092 = vpop.f32.mrf.mxu0
    %v2093 = vadd.f32 %v1828, %v2092
    %v2094 = vpop.f32.mrf.mxu0
    %2095 = vmatprep.mubr.f32.mxu0 0.0
    %v2096 = vand.u32 %v287, 4294901760
    %2097 = vmatmul.mubr.f32.gmra.mxu0 %v2096
    %v2098 = vpop.f32.mrf.mxu0
    %v2099 = vadd.f32 %v1834, %v2098
    %v2100 = vpop.f32.mrf.mxu0
    %2101 = vmatprep.mubr.f32.mxu0 0.0
    %v2102 = vand.u32 %v290, 4294901760
    %2103 = vmatmul.mubr.f32.gmra.mxu0 %v2102
    %v2104 = vpop.f32.mrf.mxu0
    %v2105 = vadd.f32 %v1840, %v2104
    %v2106 = vpop.f32.mrf.mxu0
    %2107 = vmatprep.mubr.f32.mxu0 0.0
    %v2108 = vand.u32 %v293, 4294901760
    %2109 = vmatmul.mubr.f32.gmra.mxu0 %v2108
    %v2110 = vpop.f32.mrf.mxu0
    %v2111 = vadd.f32 %v1846, %v2110
    %v2112 = vpop.f32.mrf.mxu0
    %2113 = vmatprep.mubr.f32.mxu0 0.0
    %v2114 = vand.u32 %v296, 4294901760
    %2115 = vmatmul.mubr.f32.gmra.mxu0 %v2114
    %v2116 = vpop.f32.mrf.mxu0
    %v2117 = vadd.f32 %v1852, %v2116
    %v2118 = vpop.f32.mrf.mxu0
    %2119 = vmatprep.mubr.f32.mxu0 0.0
    %v2120 = vand.u32 %v299, 4294901760
    %2121 = vmatmul.mubr.f32.gmra.mxu0 %v2120
    %v2122 = vpop.f32.mrf.mxu0
    %v2123 = vadd.f32 %v1858, %v2122
    %v2124 = vpop.f32.mrf.mxu0
    %2125 = vmatprep.mubr.f32.mxu0 0.0
    %v2126 = vand.u32 %v302, 4294901760
    %2127 = vmatmul.mubr.f32.gmra.mxu0 %v2126
    %v2128 = vpop.f32.mrf.mxu0
    %v2129 = vadd.f32 %v1864, %v2128
    %v2130 = vpop.f32.mrf.mxu0
    %2131 = vmatprep.mubr.f32.mxu0 0.0
    %v2132 = vand.u32 %v305, 4294901760
    %2133 = vmatmul.mubr.f32.gmra.mxu0 %v2132
    %v2134 = vpop.f32.mrf.mxu0
    %v2135 = vadd.f32 %v1870, %v2134
    %v2136 = vpop.f32.mrf.mxu0
    %2137 = vmatprep.mubr.f32.mxu0 0.0
    %v2138 = vand.u32 %v308, 4294901760
    %2139 = vmatmul.mubr.f32.gmra.mxu0 %v2138
    %v2140 = vpop.f32.mrf.mxu0
    %v2141 = vadd.f32 %v1876, %v2140
    %v2142 = vpop.f32.mrf.mxu0
    %2143 = vmatprep.mubr.f32.mxu0 0.0
    %v2144 = vand.u32 %v311, 4294901760
    %2145 = vmatmul.mubr.f32.gmra.mxu0 %v2144
    %v2146 = vpop.f32.mrf.mxu0
    %v2147 = vadd.f32 %v1882, %v2146
    %v2148 = vpop.f32.mrf.mxu0
    %2149 = vmatprep.mubr.f32.mxu0 0.0
    %v2150 = vand.u32 %v314, 4294901760
    %2151 = vmatmul.mubr.f32.gmra.mxu0 %v2150
    %v2152 = vpop.f32.mrf.mxu0
    %v2153 = vadd.f32 %v1888, %v2152
    %v2154 = vpop.f32.mrf.mxu0
    %2155 = vmatprep.mubr.f32.mxu0 0.0
    %v2156 = vand.u32 %v317, 4294901760
    %2157 = vmatmul.mubr.f32.gmra.mxu0 %v2156
    %v2158 = vpop.f32.mrf.mxu0
    %v2159 = vadd.f32 %v1894, %v2158
    %v2160 = vpop.f32.mrf.mxu0
    %2161 = vmatprep.mubr.f32.mxu0 0.0
    %v2162 = vand.u32 %v320, 4294901760
    %2163 = vmatmul.mubr.f32.gmra.mxu0 %v2162
    %v2164 = vpop.f32.mrf.mxu0
    %v2165 = vadd.f32 %v1900, %v2164
    %v2166 = vpop.f32.mrf.mxu0
    %2167 = vmatprep.mubr.f32.mxu0 0.0
    %v2168 = vand.u32 %v323, 4294901760
    %2169 = vmatmul.mubr.f32.gmra.mxu0 %v2168
    %v2170 = vpop.f32.mrf.mxu0
    %v2171 = vadd.f32 %v1906, %v2170
    %v2172 = vpop.f32.mrf.mxu0
    %2173 = vmatprep.mubr.f32.mxu0 0.0
    %v2174 = vand.u32 %v326, 4294901760
    %2175 = vmatmul.mubr.f32.gmra.mxu0 %v2174
    %v2176 = vpop.f32.mrf.mxu0
    %v2177 = vadd.f32 %v1912, %v2176
    %v2178 = vpop.f32.mrf.mxu0
    %2179 = vmatprep.mubr.f32.mxu0 0.0
    %v2180 = vand.u32 %v329, 4294901760
    %2181 = vmatmul.mubr.f32.gmra.mxu0 %v2180
    %v2182 = vpop.f32.mrf.mxu0
    %v2183 = vadd.f32 %v1918, %v2182
    %v2184 = vpop.f32.mrf.mxu0
    %2185 = vmatprep.mubr.f32.mxu0 0.0
    %v2186 = vand.u32 %v332, 4294901760
    %2187 = vmatmul.mubr.f32.gmra.mxu0 %v2186
    %v2188 = vpop.f32.mrf.mxu0
    %v2189 = vadd.f32 %v1924, %v2188
    %v2190 = vpop.f32.mrf.mxu0
    %2191 = vmatprep.mubr.f32.mxu0 0.0
    %v2192 = vand.u32 %v335, 4294901760
    %2193 = vmatmul.mubr.f32.gmra.mxu0 %v2192
    %v2194 = vpop.f32.mrf.mxu0
    %v2195 = vadd.f32 %v1930, %v2194
    %v2196 = vpop.f32.mrf.mxu0
    %2197 = vmatprep.mubr.f32.mxu0 0.0
    %v2198 = vand.u32 %v338, 4294901760
    %2199 = vmatmul.mubr.f32.gmra.mxu0 %v2198
    %v2200 = vpop.f32.mrf.mxu0
    %v2201 = vadd.f32 %v1936, %v2200
    %v2202 = vpop.f32.mrf.mxu0
    %2203 = vmatprep.mubr.f32.mxu0 0.0
    %v2204 = vand.u32 %v341, 4294901760
    %2205 = vmatmul.mubr.f32.gmra.mxu0 %v2204
    %v2206 = vpop.f32.mrf.mxu0
    %v2207 = vadd.f32 %v1942, %v2206
    %v2208 = vpop.f32.mrf.mxu0
    %2209 = vmatprep.mubr.f32.mxu0 0.0
    %v2210 = vand.u32 %v344, 4294901760
    %2211 = vmatmul.mubr.f32.gmra.mxu0 %v2210
    %v2212 = vpop.f32.mrf.mxu0
    %v2213 = vadd.f32 %v1948, %v2212
    %v2214 = vpop.f32.mrf.mxu0
    %2215 = vdwg.mxu0
    %2216 = vadd.xlane.f32.xlu0 %v2027
    %v2217 = vpop.xlane.xlu0 %2216
    %2218 = vadd.xlane.f32.xlu0 %v2033
    %v2219 = vpop.xlane.xlu0 %2218
    %2220 = vadd.xlane.f32.xlu0 %v2039
    %v2221 = vpop.xlane.xlu0 %2220
    %2222 = vadd.xlane.f32.xlu0 %v2045
    %v2223 = vpop.xlane.xlu0 %2222
    %2224 = vadd.xlane.f32.xlu0 %v2051
    %v2225 = vpop.xlane.xlu0 %2224
    %2226 = vadd.xlane.f32.xlu0 %v2057
    %v2227 = vpop.xlane.xlu0 %2226
    %2228 = vadd.xlane.f32.xlu0 %v2063
    %v2229 = vpop.xlane.xlu0 %2228
    %2230 = vadd.xlane.f32.xlu0 %v2069
    %v2231 = vpop.xlane.xlu0 %2230
    %2232 = vadd.xlane.f32.xlu0 %v2075
    %v2233 = vpop.xlane.xlu0 %2232
    %2234 = vadd.xlane.f32.xlu0 %v2081
    %v2235 = vpop.xlane.xlu0 %2234
    %2236 = vadd.xlane.f32.xlu0 %v2087
    %v2237 = vpop.xlane.xlu0 %2236
    %2238 = vadd.xlane.f32.xlu0 %v2093
    %v2239 = vpop.xlane.xlu0 %2238
    %2240 = vadd.xlane.f32.xlu0 %v2099
    %v2241 = vpop.xlane.xlu0 %2240
    %2242 = vadd.xlane.f32.xlu0 %v2105
    %v2243 = vpop.xlane.xlu0 %2242
    %2244 = vadd.xlane.f32.xlu0 %v2111
    %v2245 = vpop.xlane.xlu0 %2244
    %2246 = vadd.xlane.f32.xlu0 %v2117
    %v2247 = vpop.xlane.xlu0 %2246
    %2248 = vadd.xlane.f32.xlu0 %v2123
    %v2249 = vpop.xlane.xlu0 %2248
    %2250 = vadd.xlane.f32.xlu0 %v2129
    %v2251 = vpop.xlane.xlu0 %2250
    %2252 = vadd.xlane.f32.xlu0 %v2135
    %v2253 = vpop.xlane.xlu0 %2252
    %2254 = vadd.xlane.f32.xlu0 %v2141
    %v2255 = vpop.xlane.xlu0 %2254
    %2256 = vadd.xlane.f32.xlu0 %v2147
    %v2257 = vpop.xlane.xlu0 %2256
    %2258 = vadd.xlane.f32.xlu0 %v2153
    %v2259 = vpop.xlane.xlu0 %2258
    %2260 = vadd.xlane.f32.xlu0 %v2159
    %v2261 = vpop.xlane.xlu0 %2260
    %2262 = vadd.xlane.f32.xlu0 %v2165
    %v2263 = vpop.xlane.xlu0 %2262
    %2264 = vadd.xlane.f32.xlu0 %v2171
    %v2265 = vpop.xlane.xlu0 %2264
    %2266 = vadd.xlane.f32.xlu0 %v2177
    %v2267 = vpop.xlane.xlu0 %2266
    %2268 = vadd.xlane.f32.xlu0 %v2183
    %v2269 = vpop.xlane.xlu0 %2268
    %2270 = vadd.xlane.f32.xlu0 %v2189
    %v2271 = vpop.xlane.xlu0 %2270
    %2272 = vadd.xlane.f32.xlu0 %v2195
    %v2273 = vpop.xlane.xlu0 %2272
    %2274 = vadd.xlane.f32.xlu0 %v2201
    %v2275 = vpop.xlane.xlu0 %2274
    %2276 = vadd.xlane.f32.xlu0 %v2207
    %v2277 = vpop.xlane.xlu0 %2276
    %2278 = vadd.xlane.f32.xlu0 %v2213
    %v2279 = vpop.xlane.xlu0 %2278
    %v2280 = vrcp.pop 128.0
    %v2281 = vmul.f32 %v2217, %v2280
    %v2282 = vmul.f32 %v2219, %v2280
    %v2283 = vmul.f32 %v2221, %v2280
    %v2284 = vmul.f32 %v2223, %v2280
    %v2285 = vmul.f32 %v2225, %v2280
    %v2286 = vmul.f32 %v2227, %v2280
    %v2287 = vmul.f32 %v2229, %v2280
    %v2288 = vmul.f32 %v2231, %v2280
    %v2289 = vmul.f32 %v2233, %v2280
    %v2290 = vmul.f32 %v2235, %v2280
    %v2291 = vmul.f32 %v2237, %v2280
    %v2292 = vmul.f32 %v2239, %v2280
    %v2293 = vmul.f32 %v2241, %v2280
    %v2294 = vmul.f32 %v2243, %v2280
    %v2295 = vmul.f32 %v2245, %v2280
    %v2296 = vmul.f32 %v2247, %v2280
    %v2297 = vmul.f32 %v2249, %v2280
    %v2298 = vmul.f32 %v2251, %v2280
    %v2299 = vmul.f32 %v2253, %v2280
    %v2300 = vmul.f32 %v2255, %v2280
    %v2301 = vmul.f32 %v2257, %v2280
    %v2302 = vmul.f32 %v2259, %v2280
    %v2303 = vmul.f32 %v2261, %v2280
    %v2304 = vmul.f32 %v2263, %v2280
    %v2305 = vmul.f32 %v2265, %v2280
    %v2306 = vmul.f32 %v2267, %v2280
    %v2307 = vmul.f32 %v2269, %v2280
    %v2308 = vmul.f32 %v2271, %v2280
    %v2309 = vmul.f32 %v2273, %v2280
    %v2310 = vmul.f32 %v2275, %v2280
    %v2311 = vmul.f32 %v2277, %v2280
    %v2312 = vmul.f32 %v2279, %v2280
    %v2313 = vsub.f32 %v2027, %v2281
    %v2314 = vsub.f32 %v2033, %v2282
    %v2315 = vsub.f32 %v2039, %v2283
    %v2316 = vsub.f32 %v2045, %v2284
    %v2317 = vsub.f32 %v2051, %v2285
    %v2318 = vsub.f32 %v2057, %v2286
    %v2319 = vsub.f32 %v2063, %v2287
    %v2320 = vsub.f32 %v2069, %v2288
    %v2321 = vsub.f32 %v2075, %v2289
    %v2322 = vsub.f32 %v2081, %v2290
    %v2323 = vsub.f32 %v2087, %v2291
    %v2324 = vsub.f32 %v2093, %v2292
    %v2325 = vsub.f32 %v2099, %v2293
    %v2326 = vsub.f32 %v2105, %v2294
    %v2327 = vsub.f32 %v2111, %v2295
    %v2328 = vsub.f32 %v2117, %v2296
    %v2329 = vsub.f32 %v2123, %v2297
    %v2330 = vsub.f32 %v2129, %v2298
    %v2331 = vsub.f32 %v2135, %v2299
    %v2332 = vsub.f32 %v2141, %v2300
    %v2333 = vsub.f32 %v2147, %v2301
    %v2334 = vsub.f32 %v2153, %v2302
    %v2335 = vsub.f32 %v2159, %v2303
    %v2336 = vsub.f32 %v2165, %v2304
    %v2337 = vsub.f32 %v2171, %v2305
    %v2338 = vsub.f32 %v2177, %v2306
    %v2339 = vsub.f32 %v2183, %v2307
    %v2340 = vsub.f32 %v2189, %v2308
    %v2341 = vsub.f32 %v2195, %v2309
    %v2342 = vsub.f32 %v2201, %v2310
    %v2343 = vsub.f32 %v2207, %v2311
    %v2344 = vsub.f32 %v2213, %v2312
    %v2345 = vmul.f32 %v2313, %v2313
    %v2346 = vmul.f32 %v2314, %v2314
    %v2347 = vmul.f32 %v2315, %v2315
    %v2348 = vmul.f32 %v2316, %v2316
    %v2349 = vmul.f32 %v2317, %v2317
    %v2350 = vmul.f32 %v2318, %v2318
    %v2351 = vmul.f32 %v2319, %v2319
    %v2352 = vmul.f32 %v2320, %v2320
    %v2353 = vmul.f32 %v2321, %v2321
    %v2354 = vmul.f32 %v2322, %v2322
    %v2355 = vmul.f32 %v2323, %v2323
    %v2356 = vmul.f32 %v2324, %v2324
    %v2357 = vmul.f32 %v2325, %v2325
    %v2358 = vmul.f32 %v2326, %v2326
    %v2359 = vmul.f32 %v2327, %v2327
    %v2360 = vmul.f32 %v2328, %v2328
    %v2361 = vmul.f32 %v2329, %v2329
    %v2362 = vmul.f32 %v2330, %v2330
    %v2363 = vmul.f32 %v2331, %v2331
    %v2364 = vmul.f32 %v2332, %v2332
    %v2365 = vmul.f32 %v2333, %v2333
    %v2366 = vmul.f32 %v2334, %v2334
    %v2367 = vmul.f32 %v2335, %v2335
    %v2368 = vmul.f32 %v2336, %v2336
    %v2369 = vmul.f32 %v2337, %v2337
    %v2370 = vmul.f32 %v2338, %v2338
    %v2371 = vmul.f32 %v2339, %v2339
    %v2372 = vmul.f32 %v2340, %v2340
    %v2373 = vmul.f32 %v2341, %v2341
    %v2374 = vmul.f32 %v2342, %v2342
    %v2375 = vmul.f32 %v2343, %v2343
    %v2376 = vmul.f32 %v2344, %v2344
    %2377 = vadd.xlane.f32.xlu0 %v2345
    %v2378 = vpop.xlane.xlu0 %2377
    %2379 = vadd.xlane.f32.xlu0 %v2346
    %v2380 = vpop.xlane.xlu0 %2379
    %2381 = vadd.xlane.f32.xlu0 %v2347
    %v2382 = vpop.xlane.xlu0 %2381
    %2383 = vadd.xlane.f32.xlu0 %v2348
    %v2384 = vpop.xlane.xlu0 %2383
    %2385 = vadd.xlane.f32.xlu0 %v2349
    %v2386 = vpop.xlane.xlu0 %2385
    %2387 = vadd.xlane.f32.xlu0 %v2350
    %v2388 = vpop.xlane.xlu0 %2387
    %2389 = vadd.xlane.f32.xlu0 %v2351
    %v2390 = vpop.xlane.xlu0 %2389
    %2391 = vadd.xlane.f32.xlu0 %v2352
    %v2392 = vpop.xlane.xlu0 %2391
    %2393 = vadd.xlane.f32.xlu0 %v2353
    %v2394 = vpop.xlane.xlu0 %2393
    %2395 = vadd.xlane.f32.xlu0 %v2354
    %v2396 = vpop.xlane.xlu0 %2395
    %2397 = vadd.xlane.f32.xlu0 %v2355
    %v2398 = vpop.xlane.xlu0 %2397
    %2399 = vadd.xlane.f32.xlu0 %v2356
    %v2400 = vpop.xlane.xlu0 %2399
    %2401 = vadd.xlane.f32.xlu0 %v2357
    %v2402 = vpop.xlane.xlu0 %2401
    %2403 = vadd.xlane.f32.xlu0 %v2358
    %v2404 = vpop.xlane.xlu0 %2403
    %2405 = vadd.xlane.f32.xlu0 %v2359
    %v2406 = vpop.xlane.xlu0 %2405
    %2407 = vadd.xlane.f32.xlu0 %v2360
    %v2408 = vpop.xlane.xlu0 %2407
    %2409 = vadd.xlane.f32.xlu0 %v2361
    %v2410 = vpop.xlane.xlu0 %2409
    %2411 = vadd.xlane.f32.xlu0 %v2362
    %v2412 = vpop.xlane.xlu0 %2411
    %2413 = vadd.xlane.f32.xlu0 %v2363
    %v2414 = vpop.xlane.xlu0 %2413
    %2415 = vadd.xlane.f32.xlu0 %v2364
    %v2416 = vpop.xlane.xlu0 %2415
    %2417 = vadd.xlane.f32.xlu0 %v2365
    %v2418 = vpop.xlane.xlu0 %2417
    %2419 = vadd.xlane.f32.xlu0 %v2366
    %v2420 = vpop.xlane.xlu0 %2419
    %2421 = vadd.xlane.f32.xlu0 %v2367
    %v2422 = vpop.xlane.xlu0 %2421
    %2423 = vadd.xlane.f32.xlu0 %v2368
    %v2424 = vpop.xlane.xlu0 %2423
    %2425 = vadd.xlane.f32.xlu0 %v2369
    %v2426 = vpop.xlane.xlu0 %2425
    %2427 = vadd.xlane.f32.xlu0 %v2370
    %v2428 = vpop.xlane.xlu0 %2427
    %2429 = vadd.xlane.f32.xlu0 %v2371
    %v2430 = vpop.xlane.xlu0 %2429
    %2431 = vadd.xlane.f32.xlu0 %v2372
    %v2432 = vpop.xlane.xlu0 %2431
    %2433 = vadd.xlane.f32.xlu0 %v2373
    %v2434 = vpop.xlane.xlu0 %2433
    %2435 = vadd.xlane.f32.xlu0 %v2374
    %v2436 = vpop.xlane.xlu0 %2435
    %2437 = vadd.xlane.f32.xlu0 %v2375
    %v2438 = vpop.xlane.xlu0 %2437
    %2439 = vadd.xlane.f32.xlu0 %v2376
    %v2440 = vpop.xlane.xlu0 %2439
    %v2441 = vmul.f32 %v2378, %v2280
    %v2442 = vmul.f32 %v2380, %v2280
    %v2443 = vmul.f32 %v2382, %v2280
    %v2444 = vmul.f32 %v2384, %v2280
    %v2445 = vmul.f32 %v2386, %v2280
    %v2446 = vmul.f32 %v2388, %v2280
    %v2447 = vmul.f32 %v2390, %v2280
    %v2448 = vmul.f32 %v2392, %v2280
    %v2449 = vmul.f32 %v2394, %v2280
    %v2450 = vmul.f32 %v2396, %v2280
    %v2451 = vmul.f32 %v2398, %v2280
    %v2452 = vmul.f32 %v2400, %v2280
    %v2453 = vmul.f32 %v2402, %v2280
    %v2454 = vmul.f32 %v2404, %v2280
    %v2455 = vmul.f32 %v2406, %v2280
    %v2456 = vmul.f32 %v2408, %v2280
    %v2457 = vmul.f32 %v2410, %v2280
    %v2458 = vmul.f32 %v2412, %v2280
    %v2459 = vmul.f32 %v2414, %v2280
    %v2460 = vmul.f32 %v2416, %v2280
    %v2461 = vmul.f32 %v2418, %v2280
    %v2462 = vmul.f32 %v2420, %v2280
    %v2463 = vmul.f32 %v2422, %v2280
    %v2464 = vmul.f32 %v2424, %v2280
    %v2465 = vmul.f32 %v2426, %v2280
    %v2466 = vmul.f32 %v2428, %v2280
    %v2467 = vmul.f32 %v2430, %v2280
    %v2468 = vmul.f32 %v2432, %v2280
    %v2469 = vmul.f32 %v2434, %v2280
    %v2470 = vmul.f32 %v2436, %v2280
    %v2471 = vmul.f32 %v2438, %v2280
    %v2472 = vmul.f32 %v2440, %v2280
    %v2473 = vadd.f32 %v2441, 1e-05
    %v2474 = vadd.f32 %v2442, 1e-05
    %v2475 = vadd.f32 %v2443, 1e-05
    %v2476 = vadd.f32 %v2444, 1e-05
    %v2477 = vadd.f32 %v2445, 1e-05
    %v2478 = vadd.f32 %v2446, 1e-05
    %v2479 = vadd.f32 %v2447, 1e-05
    %v2480 = vadd.f32 %v2448, 1e-05
    %v2481 = vadd.f32 %v2449, 1e-05
    %v2482 = vadd.f32 %v2450, 1e-05
    %v2483 = vadd.f32 %v2451, 1e-05
    %v2484 = vadd.f32 %v2452, 1e-05
    %v2485 = vadd.f32 %v2453, 1e-05
    %v2486 = vadd.f32 %v2454, 1e-05
    %v2487 = vadd.f32 %v2455, 1e-05
    %v2488 = vadd.f32 %v2456, 1e-05
    %v2489 = vadd.f32 %v2457, 1e-05
    %v2490 = vadd.f32 %v2458, 1e-05
    %v2491 = vadd.f32 %v2459, 1e-05
    %v2492 = vadd.f32 %v2460, 1e-05
    %v2493 = vadd.f32 %v2461, 1e-05
    %v2494 = vadd.f32 %v2462, 1e-05
    %v2495 = vadd.f32 %v2463, 1e-05
    %v2496 = vadd.f32 %v2464, 1e-05
    %v2497 = vadd.f32 %v2465, 1e-05
    %v2498 = vadd.f32 %v2466, 1e-05
    %v2499 = vadd.f32 %v2467, 1e-05
    %v2500 = vadd.f32 %v2468, 1e-05
    %v2501 = vadd.f32 %v2469, 1e-05
    %v2502 = vadd.f32 %v2470, 1e-05
    %v2503 = vadd.f32 %v2471, 1e-05
    %v2504 = vadd.f32 %v2472, 1e-05
    %v2505 = vrsqrt.pop %v2473
    %v2506 = vrsqrt.pop %v2474
    %v2507 = vrsqrt.pop %v2475
    %v2508 = vrsqrt.pop %v2476
    %v2509 = vrsqrt.pop %v2477
    %v2510 = vrsqrt.pop %v2478
    %v2511 = vrsqrt.pop %v2479
    %v2512 = vrsqrt.pop %v2480
    %v2513 = vrsqrt.pop %v2481
    %v2514 = vrsqrt.pop %v2482
    %v2515 = vrsqrt.pop %v2483
    %v2516 = vrsqrt.pop %v2484
    %v2517 = vrsqrt.pop %v2485
    %v2518 = vrsqrt.pop %v2486
    %v2519 = vrsqrt.pop %v2487
    %v2520 = vrsqrt.pop %v2488
    %v2521 = vrsqrt.pop %v2489
    %v2522 = vrsqrt.pop %v2490
    %v2523 = vrsqrt.pop %v2491
    %v2524 = vrsqrt.pop %v2492
    %v2525 = vrsqrt.pop %v2493
    %v2526 = vrsqrt.pop %v2494
    %v2527 = vrsqrt.pop %v2495
    %v2528 = vrsqrt.pop %v2496
    %v2529 = vrsqrt.pop %v2497
    %v2530 = vrsqrt.pop %v2498
    %v2531 = vrsqrt.pop %v2499
    %v2532 = vrsqrt.pop %v2500
    %v2533 = vrsqrt.pop %v2501
    %v2534 = vrsqrt.pop %v2502
    %v2535 = vrsqrt.pop %v2503
    %v2536 = vrsqrt.pop %v2504
    %v2537 = vld [vmem:[%s2] sm:$0x3]
    %v2538 = vmul.f32 %v2313, %v2505
    %v2539 = vmul.f32 %v2314, %v2506
    %v2540 = vmul.f32 %v2315, %v2507
    %v2541 = vmul.f32 %v2316, %v2508
    %v2542 = vmul.f32 %v2317, %v2509
    %v2543 = vmul.f32 %v2318, %v2510
    %v2544 = vmul.f32 %v2319, %v2511
    %v2545 = vmul.f32 %v2320, %v2512
    %v2546 = vmul.f32 %v2321, %v2513
    %v2547 = vmul.f32 %v2322, %v2514
    %v2548 = vmul.f32 %v2323, %v2515
    %v2549 = vmul.f32 %v2324, %v2516
    %v2550 = vmul.f32 %v2325, %v2517
    %v2551 = vmul.f32 %v2326, %v2518
    %v2552 = vmul.f32 %v2327, %v2519
    %v2553 = vmul.f32 %v2328, %v2520
    %v2554 = vmul.f32 %v2329, %v2521
    %v2555 = vmul.f32 %v2330, %v2522
    %v2556 = vmul.f32 %v2331, %v2523
    %v2557 = vmul.f32 %v2332, %v2524
    %v2558 = vmul.f32 %v2333, %v2525
    %v2559 = vmul.f32 %v2334, %v2526
    %v2560 = vmul.f32 %v2335, %v2527
    %v2561 = vmul.f32 %v2336, %v2528
    %v2562 = vmul.f32 %v2337, %v2529
    %v2563 = vmul.f32 %v2338, %v2530
    %v2564 = vmul.f32 %v2339, %v2531
    %v2565 = vmul.f32 %v2340, %v2532
    %v2566 = vmul.f32 %v2341, %v2533
    %v2567 = vmul.f32 %v2342, %v2534
    %v2568 = vmul.f32 %v2343, %v2535
    %v2569 = vmul.f32 %v2344, %v2536
    %v2570 = vlaneseq
    %v2571 = vshrl.u32 %v2570, 7
    %v2572 = vsub.s32 0, %v2571
    %v2573 = vrot.slane %v2537, %v2572
    %v2574 = vmul.f32 %v2538, %v2573
    %v2575 = vmul.f32 %v2539, %v2573
    %v2576 = vmul.f32 %v2540, %v2573
    %v2577 = vmul.f32 %v2541, %v2573
    %v2578 = vmul.f32 %v2542, %v2573
    %v2579 = vmul.f32 %v2543, %v2573
    %v2580 = vmul.f32 %v2544, %v2573
    %v2581 = vmul.f32 %v2545, %v2573
    %v2582 = vmul.f32 %v2546, %v2573
    %v2583 = vmul.f32 %v2547, %v2573
    %v2584 = vmul.f32 %v2548, %v2573
    %v2585 = vmul.f32 %v2549, %v2573
    %v2586 = vmul.f32 %v2550, %v2573
    %v2587 = vmul.f32 %v2551, %v2573
    %v2588 = vmul.f32 %v2552, %v2573
    %v2589 = vmul.f32 %v2553, %v2573
    %v2590 = vmul.f32 %v2554, %v2573
    %v2591 = vmul.f32 %v2555, %v2573
    %v2592 = vmul.f32 %v2556, %v2573
    %v2593 = vmul.f32 %v2557, %v2573
    %v2594 = vmul.f32 %v2558, %v2573
    %v2595 = vmul.f32 %v2559, %v2573
    %v2596 = vmul.f32 %v2560, %v2573
    %v2597 = vmul.f32 %v2561, %v2573
    %v2598 = vmul.f32 %v2562, %v2573
    %v2599 = vmul.f32 %v2563, %v2573
    %v2600 = vmul.f32 %v2564, %v2573
    %v2601 = vmul.f32 %v2565, %v2573
    %v2602 = vmul.f32 %v2566, %v2573
    %v2603 = vmul.f32 %v2567, %v2573
    %v2604 = vmul.f32 %v2568, %v2573
    %v2605 = vmul.f32 %v2569, %v2573
    %v2606 = vlaneseq
    %v2607 = vshrl.u32 %v2606, 7
    %v2608 = vsub.s32 1, %v2607
    %v2609 = vrot.slane %v2537, %v2608
    %v2610 = vadd.f32 %v2574, %v2609
    %v2611 = vadd.f32 %v2575, %v2609
    %v2612 = vadd.f32 %v2576, %v2609
    %v2613 = vadd.f32 %v2577, %v2609
    %v2614 = vadd.f32 %v2578, %v2609
    %v2615 = vadd.f32 %v2579, %v2609
    %v2616 = vadd.f32 %v2580, %v2609
    %v2617 = vadd.f32 %v2581, %v2609
    %v2618 = vadd.f32 %v2582, %v2609
    %v2619 = vadd.f32 %v2583, %v2609
    %v2620 = vadd.f32 %v2584, %v2609
    %v2621 = vadd.f32 %v2585, %v2609
    %v2622 = vadd.f32 %v2586, %v2609
    %v2623 = vadd.f32 %v2587, %v2609
    %v2624 = vadd.f32 %v2588, %v2609
    %v2625 = vadd.f32 %v2589, %v2609
    %v2626 = vadd.f32 %v2590, %v2609
    %v2627 = vadd.f32 %v2591, %v2609
    %v2628 = vadd.f32 %v2592, %v2609
    %v2629 = vadd.f32 %v2593, %v2609
    %v2630 = vadd.f32 %v2594, %v2609
    %v2631 = vadd.f32 %v2595, %v2609
    %v2632 = vadd.f32 %v2596, %v2609
    %v2633 = vadd.f32 %v2597, %v2609
    %v2634 = vadd.f32 %v2598, %v2609
    %v2635 = vadd.f32 %v2599, %v2609
    %v2636 = vadd.f32 %v2600, %v2609
    %v2637 = vadd.f32 %v2601, %v2609
    %v2638 = vadd.f32 %v2602, %v2609
    %v2639 = vadd.f32 %v2603, %v2609
    %v2640 = vadd.f32 %v2604, %v2609
    %v2641 = vadd.f32 %v2605, %v2609
    %2642 = vst [vmem:[#allocation2] sm:$0xff] %v2610
    %2643 = vst [vmem:[#allocation2 + $0x8] sm:$0xff] %v2611
    %2644 = vst [vmem:[#allocation2 + $0x10] sm:$0xff] %v2612
    %2645 = vst [vmem:[#allocation2 + $0x18] sm:$0xff] %v2613
    %2646 = vst [vmem:[#allocation2 + $0x20] sm:$0xff] %v2614
    %2647 = vst [vmem:[#allocation2 + $0x28] sm:$0xff] %v2615
    %2648 = vst [vmem:[#allocation2 + $0x30] sm:$0xff] %v2616
    %2649 = vst [vmem:[#allocation2 + $0x38] sm:$0xff] %v2617
    %2650 = vst [vmem:[#allocation2 + $0x40] sm:$0xff] %v2618
    %2651 = vst [vmem:[#allocation2 + $0x48] sm:$0xff] %v2619
    %2652 = vst [vmem:[#allocation2 + $0x50] sm:$0xff] %v2620
    %2653 = vst [vmem:[#allocation2 + $0x58] sm:$0xff] %v2621
    %2654 = vst [vmem:[#allocation2 + $0x60] sm:$0xff] %v2622
    %2655 = vst [vmem:[#allocation2 + $0x68] sm:$0xff] %v2623
    %2656 = vst [vmem:[#allocation2 + $0x70] sm:$0xff] %v2624
    %2657 = vst [vmem:[#allocation2 + $0x78] sm:$0xff] %v2625
    %2658 = vst [vmem:[#allocation2 + $0x80] sm:$0xff] %v2626
    %2659 = vst [vmem:[#allocation2 + $0x88] sm:$0xff] %v2627
    %2660 = vst [vmem:[#allocation2 + $0x90] sm:$0xff] %v2628
    %2661 = vst [vmem:[#allocation2 + $0x98] sm:$0xff] %v2629
    %2662 = vst [vmem:[#allocation2 + $0xa0] sm:$0xff] %v2630
    %2663 = vst [vmem:[#allocation2 + $0xa8] sm:$0xff] %v2631
    %2664 = vst [vmem:[#allocation2 + $0xb0] sm:$0xff] %v2632
    %2665 = vst [vmem:[#allocation2 + $0xb8] sm:$0xff] %v2633
    %2666 = vst [vmem:[#allocation2 + $0xc0] sm:$0xff] %v2634
    %2667 = vst [vmem:[#allocation2 + $0xc8] sm:$0xff] %v2635
    %2668 = vst [vmem:[#allocation2 + $0xd0] sm:$0xff] %v2636
    %2669 = vst [vmem:[#allocation2 + $0xd8] sm:$0xff] %v2637
    %2670 = vst [vmem:[#allocation2 + $0xe0] sm:$0xff] %v2638
    %2671 = vst [vmem:[#allocation2 + $0xe8] sm:$0xff] %v2639
    %2672 = vst [vmem:[#allocation2 + $0xf0] sm:$0xff] %v2640
    %2673 = vst [vmem:[#allocation2 + $0xf8] sm:$0xff] %v2641
    // Predicated region
    $region14: #{tpu_custom_call.1} parent=1 // pred_check
      _
    $region15: #{tpu_custom_call.1} parent=1 // pred_check_branch
      %2675 = sbr.rel (0) target = $region17
    $region16: #{tpu_custom_call.1} parent=1 // pred_region
      %s2677 = ssub.s32 4096, 4096
      %2678 = vsyncadd [#allocation3], %s2677
      %s2679 = sshll.u32 [#allocation2], 4
      %s2680 = int_to_ptr.vmem [resolvable:$true] %s2679
      %2685 = dma.vmem_to_hbm [thread:$0]  %s2680, 4096, %s3, [#allocation3], 128, 128, 8
    $region17: #{tpu_custom_call.1} parent=1 // pred_fallthru
      _
    // Predicated region
    $region18: #{tpu_custom_call.1} parent=1 // pred_check
      _
    $region19: #{tpu_custom_call.1} parent=1 // pred_check_branch
      %2687 = sbr.rel (0) target = $region21
    $region20: #{tpu_custom_call.1} parent=1 // pred_region
      %2688 = dma.done [#allocation3], 4096
    $region21: #{tpu_custom_call.1} parent=1 // pred_fallthru
      _
    %2689 = vsyncpa [#allocation3], 1

</llo_original>
